<compile_context>
chip_gen: v5e
topology: v5e:2x2
jax: 0.10.0
libtpu: 0.0.40
codegen_flags: <defaults>
</compile_context>

<pallas_src>
import functools

import jax
import jax.numpy as jnp
from jax import lax
from jax.experimental import pallas as pl
from jax.experimental.pallas import tpu as pltpu


# ----------------------------------------------------------------------------
# Static architecture configuration (Python constants -> never traced)
# ----------------------------------------------------------------------------
NUM_CLASSES = 4
NUM_ANCHORS = 4
LANE = 128
SUBLANE = 8
MAX_TM = 2048                      # max output rows per grid step
VMEM_LIMIT = 32 * 1024 * 1024      # explicit scoped-VMEM budget (safe on v5e/v6e/v7x)

# (kh, kw, cin, cout, stride, pad)
BASE_CFG = [(3, 3, 3, 8, 1, 1), (3, 3, 8, 16, 2, 1), (3, 3, 16, 16, 1, 1)]
BASE_SOURCES = (1, 2)                      # feature_layer[0][0] = [1, 2, 'S']
EXTRAS_CFG = [(1, 1, 16, 16, 1, 0), (3, 3, 16, 32, 2, 1)]
TRANSFORM_CFG = [(1, 1, 16, 16, 1, 0), (1, 1, 16, 16, 1, 0), (1, 1, 32, 16, 1, 0)]
NORM_C = 48                                # 16 * 3 transforms
PYRAMID_CFG = [(3, 3, 48, 32, 1, 1), (3, 3, 32, 32, 2, 1), (3, 3, 32, 32, 2, 1)]
HEAD_CIN = 32
N_LOC = NUM_ANCHORS * 4
N_CONF = NUM_ANCHORS * NUM_CLASSES
HEAD_CFG = (3, 3, HEAD_CIN, N_LOC + N_CONF, 1, 1)


def _round_up(x, m):
    return (x + m - 1) // m * m


def _cdiv(a, b):
    return -(-a // b)


# ----------------------------------------------------------------------------
# Pallas kernel: direct conv (sum over taps) + bias [+ReLU] [+affine] [+softmax]
# ----------------------------------------------------------------------------
def _conv_tap_kernel(x_ref, w_ref, b_ref, *rest,
                     offs, tm, cout, relu, affine, softmax, single_tile):
    """x_ref : (Rg, Ce)    flattened, spatially padded image (VMEM resident)
       w_ref : (T, Ce, Np) per-tap weight slabs (bf16, Np = 128-padded cout)
       b_ref : (1, Np)     f32 bias row
       rest  : [scale (1,Np)] [shift (1,Np)] [group (Np,Np)]  o_ref (tm, cout)
    """
    o_ref = rest[-1]
    extra = list(rest[:-1])
    if affine:
        sc_ref = extra.pop(0)
        sh_ref = extra.pop(0)
    if softmax:
        g_ref = extra.pop(0)

    if single_tile:                 # one row-tile per image -> fully static slices
        base = 0
    else:
        base = pl.multiple_of(pl.program_id(1) * tm, SUBLANE)

    np_ = w_ref.shape[-1]
    acc = jnp.zeros((tm, np_), jnp.float32)
    for t, off in enumerate(offs):                      # static unroll over taps
        a = x_ref[pl.ds(base + off, tm), :]             # (tm, Ce) bf16
        acc = acc + jnp.dot(a, w_ref[t], preferred_element_type=jnp.float32)
    acc = acc + b_ref[...]
    if relu:
        acc = jnp.maximum(acc, 0.0)
    if affine:                                          # folded self.norm (eval BN)
        acc = acc * sc_ref[...] + sh_ref[...]
    if softmax:
        # exact per-anchor softmax over the conf columns, fully vectorized:
        # shared max over all conf cols (exact for softmax), masked exp, group
        # sums via one tiny matmul against a 0/1 block-diagonal matrix.
        col = lax.broadcasted_iota(jnp.int32, acc.shape, 1)
        is_conf = jnp.logical_and(col >= N_LOC, col < N_LOC + N_CONF)
        m = jnp.max(jnp.where(is_conf, acc, jnp.float32(-1e30)),
                    axis=-1, keepdims=True)
        e = jnp.where(is_conf, jnp.exp(acc - m), 0.0)
        s = jnp.dot(e, g_ref[...], preferred_element_type=jnp.float32)
        acc = jnp.where(is_conf, e / jnp.maximum(s, 1e-30), acc)
    o_ref[...] = acc[:, :cout].astype(o_ref.dtype)      # true-channel-width store


# ----------------------------------------------------------------------------
# Launch helper
# ----------------------------------------------------------------------------
def _launch_conv(xf, wm, brow, *, offs, tm, m_tiles, cout, relu, out_dtype,
                 scale=None, shift=None, group=None, n_per_level=None):
    NB, Rg, Ce = xf.shape
    per_level = (wm.ndim == 4)          # heads: (levels, T, Ce, Np)
    affine = scale is not None
    softmax = group is not None

    kern = functools.partial(
        _conv_tap_kernel, offs=tuple(int(o) for o in offs), tm=tm, cout=cout,
        relu=relu, affine=affine, softmax=softmax, single_tile=(m_tiles == 1))

    args = [xf, wm, brow]
    in_specs = [pl.BlockSpec((None, Rg, Ce), lambda b, i: (b, 0, 0))]
    if per_level:
        nim = n_per_level
        in_specs.append(pl.BlockSpec((None,) + wm.shape[1:],
                                     lambda b, i: (b // nim, 0, 0, 0)))
        in_specs.append(pl.BlockSpec((None,) + brow.shape[1:],
                                     lambda b, i: (b // nim, 0, 0)))
    else:
        in_specs.append(pl.BlockSpec(wm.shape, lambda b, i: (0, 0, 0)))
        in_specs.append(pl.BlockSpec(brow.shape, lambda b, i: (0, 0)))
    if affine:
        in_specs.append(pl.BlockSpec(scale.shape, lambda b, i: (0, 0)))
        in_specs.append(pl.BlockSpec(shift.shape, lambda b, i: (0, 0)))
        args += [scale, shift]
    if softmax:
        in_specs.append(pl.BlockSpec(group.shape, lambda b, i: (0, 0)))
        args.append(group)

    return pl.pallas_call(
        kern,
        out_shape=jax.ShapeDtypeStruct((NB, m_tiles * tm, cout), out_dtype),
        grid=(NB, m_tiles),
        in_specs=in_specs,
        out_specs=pl.BlockSpec((None, tm, cout), lambda b, i: (b, i, 0)),
        compiler_params=pltpu.CompilerParams(
            dimension_semantics=("parallel", "parallel"),
            vmem_limit_bytes=VMEM_LIMIT),
    )(*args)


def _plan_rows(ho, wflat, khe, kwe):
    """Row-tiling plan for flattened (padded) conv rows."""
    m_cover = ho * wflat
    tm = min(MAX_TM, _round_up(m_cover, SUBLANE))
    m_tiles = _cdiv(m_cover, tm)
    max_off = (khe - 1) * wflat + (kwe - 1)
    rows_needed = m_tiles * tm + max_off         # guard rows for the tap shifts
    return tm, m_tiles, rows_needed


# ----------------------------------------------------------------------------
# Conv wrappers (JAX side does only a single spatial pad / space-to-depth)
# ----------------------------------------------------------------------------
def conv2d(x, wm, brow, cfg, *, relu=True, scale=None, shift=None,
           out_dtype=jnp.bfloat16):
    kh, kw, cin, cout, s, p = cfg
    N, H, W, C = x.shape
    assert C == cin
    Ho = (H + 2 * p - kh) // s + 1
    Wo = (W + 2 * p - kw) // s + 1
    x = x.astype(jnp.bfloat16)

    if s == 1:
        khe, kwe, ce = kh, kw, C
        wflat = W + 2 * p
        tm, m_tiles, rows_needed = _plan_rows(Ho, wflat, khe, kwe)
        h_tot = _cdiv(rows_needed, wflat)
        xp = jnp.pad(x, ((0, 0), (p, h_tot - H - p), (p, p), (0, 0)))
        xf = xp.reshape(N, h_tot * wflat, ce)
    else:
        # stride-2 3x3 conv == 2x2 stride-1 conv on the space-to-depth input
        assert s == 2 and kh == 3 and kw == 3
        khe, kwe, ce = 2, 2, 4 * C
        wp0 = W + 2 * p
        wflat = (wp0 + (wp0 % 2)) // 2
        tm, m_tiles, rows_needed = _plan_rows(Ho, wflat, khe, kwe)
        hs_tot = _cdiv(rows_needed, wflat)
        xp = jnp.pad(x, ((0, 0), (p, 2 * hs_tot - H - p),
                         (p, 2 * wflat - W - p), (0, 0)))
        xf = xp.reshape(N, hs_tot, 2, wflat, 2, C)
        xf = xf.transpose(0, 1, 3, 2, 4, 5).reshape(N, hs_tot * wflat, ce)

    offs = [di * wflat + dj for di in range(khe) for dj in range(kwe)]
    out = _launch_conv(xf, wm, brow, offs=offs, tm=tm, m_tiles=m_tiles,
                       cout=cout, relu=relu, out_dtype=out_dtype,
                       scale=scale, shift=shift)
    # single valid-region extraction (rows computed on the padded grid)
    return out[:, :Ho * wflat, :].reshape(N, Ho, wflat, cout)[:, :, :Wo, :]


def head_convs(feats, w_all, b_all, group, *, apply_softmax):
    """All three fused loc+conf head levels in ONE pallas_call."""
    kh, kw, cin, cout, s, p = HEAD_CFG
    N = feats[0].shape[0]
    L = len(feats)
    hs = [int(f.shape[1]) for f in feats]
    ws = [int(f.shape[2]) for f in feats]
    wc = max(ws) + 2 * p                              # shared canvas width
    tm, m_tiles, rows_needed = _plan_rows(max(hs), wc, kh, kw)
    hc = _cdiv(rows_needed, wc)
    offs = [di * wc + dj for di in range(kh) for dj in range(kw)]

    lvls = []
    for f in feats:
        fh, fw = int(f.shape[1]), int(f.shape[2])
        fp = jnp.pad(f.astype(jnp.bfloat16),
                     ((0, 0), (p, hc - fh - p), (p, wc - fw - p), (0, 0)))
        lvls.append(fp.reshape(N, hc * wc, cin))
    xf = jnp.stack(lvls, axis=0).reshape(L * N, hc * wc, cin)   # levels -> batch axis

    out = _launch_conv(xf, w_all, b_all, offs=offs, tm=tm, m_tiles=m_tiles,
                       cout=cout, relu=False, out_dtype=jnp.float32,
                       group=(group if apply_softmax else None), n_per_level=N)
    out = out.reshape(L, N, m_tiles * tm, cout)

    locs, confs = [], []
    for k in range(L):
        o = out[k][:, :hs[k] * wc, :].reshape(N, hs[k], wc, cout)[:, :, :ws[k], :]
        locs.append(o[..., :N_LOC].reshape(N, -1))
        confs.append(o[..., N_LOC:N_LOC + N_CONF].reshape(N, -1))
    return jnp.concatenate(locs, axis=1), jnp.concatenate(confs, axis=1)


# ----------------------------------------------------------------------------
# Parameters: raw (mirrors the torch module) and prepared (fused / padded)
# ----------------------------------------------------------------------------
def make_params(key):
    keys = iter(jax.random.split(key, 64))

    def conv_p(kh, kw, cin, cout):
        w = 0.1 * jax.random.normal(next(keys), (kh, kw, cin, cout), jnp.float32)
        b = 0.01 * jax.random.normal(next(keys), (cout,), jnp.float32)
        return w, b

    def bn_p(c):
        gamma = 1.0 + 0.1 * jax.random.normal(next(keys), (c,), jnp.float32)
        beta = 0.1 * jax.random.normal(next(keys), (c,), jnp.float32)
        mean = 0.1 * jax.random.normal(next(keys), (c,), jnp.float32)
        var = 1.0 + 0.1 * jnp.abs(jax.random.normal(next(keys), (c,), jnp.float32))
        return gamma, beta, mean, var

    raw = {}
    raw["base"] = [conv_p(kh, kw, ci, co) for (kh, kw, ci, co, _, _) in BASE_CFG]
    raw["extras"] = [conv_p(kh, kw, ci, co) for (kh, kw, ci, co, _, _) in EXTRAS_CFG]
    raw["transforms"] = [(conv_p(kh, kw, ci, co), bn_p(co))
                         for (kh, kw, ci, co, _, _) in TRANSFORM_CFG]
    raw["norm"] = bn_p(NORM_C)
    raw["pyramids"] = [(conv_p(kh, kw, ci, co), bn_p(co))
                       for (kh, kw, ci, co, _, _) in PYRAMID_CFG]
    raw["loc"] = [conv_p(3, 3, HEAD_CIN, N_LOC) for _ in range(3)]
    raw["conf"] = [conv_p(3, 3, HEAD_CIN, N_CONF) for _ in range(3)]
    return raw


def fold_bn(w, b, gamma, beta, mean, var, eps=1e-5):
    """Fold an eval-mode BatchNorm that follows a conv into the conv (exact)."""
    scale = gamma / jnp.sqrt(var + eps)
    return w * scale, (b - mean) * scale + beta


def _prep_conv(w, b, cfg):
    """(kh,kw,cin,cout) -> per-tap slabs (T, Ce, 128) bf16 + (1,128) f32 bias.
    Stride-2 convs are rewritten as 2x2 stride-1 convs on space-to-depth input."""
    kh, kw, cin, cout, s, p = cfg
    if s == 2:
        w2 = jnp.zeros((2, 2, 2, 2, cin, cout), w.dtype)
        for di in range(kh):
            for dj in range(kw):
                w2 = w2.at[di // 2, dj // 2, di % 2, dj % 2].set(w[di, dj])
        w_eff = w2.reshape(2, 2, 4 * cin, cout)
        t, ce = 4, 4 * cin
    else:
        w_eff = w
        t, ce = kh * kw, cin
    np_ = _round_up(cout, LANE)
    wm = jnp.zeros((t, ce, np_), jnp.bfloat16)
    wm = wm.at[:, :, :cout].set(w_eff.reshape(t, ce, cout).astype(jnp.bfloat16))
    brow = jnp.zeros((1, np_), jnp.float32).at[0, :cout].set(b.astype(jnp.float32))
    return wm, brow


def _affine_rows(scale, shift):
    c = scale.shape[0]
    np_ = _round_up(c, LANE)
    srow = jnp.ones((1, np_), jnp.float32).at[0, :c].set(scale.astype(jnp.float32))
    hrow = jnp.zeros((1, np_), jnp.float32).at[0, :c].set(shift.astype(jnp.float32))
    return srow, hrow


def prepare_params(raw):
    p = {}
    p["base"] = [_prep_conv(w, b, cfg) for (w, b), cfg in zip(raw["base"], BASE_CFG)]
    p["extras"] = [_prep_conv(w, b, cfg)
                   for (w, b), cfg in zip(raw["extras"], EXTRAS_CFG)]

    # self.norm (eval-mode BN == per-channel affine) is applied in the transform
    # kernels' epilogues: exact because it commutes with the bilinear upsample
    # and with the channel concat, and pyramids[0] then pads with plain zeros
    # (matching torch, where padding happens after the norm).
    gamma, beta, mean, var = raw["norm"]
    n_scale = gamma / jnp.sqrt(var + 1e-5)
    n_shift = beta - mean * n_scale

    trs = []
    for k, ((wb, bn), cfg) in enumerate(zip(raw["transforms"], TRANSFORM_CFG)):
        w, b = fold_bn(*wb, *bn)
        wm, brow = _prep_conv(w, b, cfg)
        cout = cfg[3]
        srow, hrow = _affine_rows(n_scale[k * cout:(k + 1) * cout],
                                  n_shift[k * cout:(k + 1) * cout])
        trs.append((wm, brow, srow, hrow))
    p["transforms"] = trs

    p["pyramids"] = [_prep_conv(*fold_bn(*wb, *bn), cfg)
                     for (wb, bn), cfg in zip(raw["pyramids"], PYRAMID_CFG)]

    # Fused per-level loc+conf head weights, stacked so all 3 levels run in one
    # pallas_call (level selected by the weight BlockSpec index_map).
    ws, bs = [], []
    for (lw, lb), (cw, cb) in zip(raw["loc"], raw["conf"]):
        wm, brow = _prep_conv(jnp.concatenate([lw, cw], axis=-1),
                              jnp.concatenate([lb, cb], axis=-1), HEAD_CFG)
        ws.append(wm)
        bs.append(brow)
    p["heads"] = (jnp.stack(ws, 0), jnp.stack(bs, 0))

    # 0/1 block-diagonal group matrix for the fused per-anchor softmax.
    idx = jnp.arange(LANE)
    in_conf = (idx >= N_LOC) & (idx < N_LOC + N_CONF)
    grp = (idx - N_LOC) // NUM_CLASSES
    g = in_conf[:, None] & in_conf[None, :] & (grp[:, None] == grp[None, :])
    p["softmax_g"] = g.astype(jnp.float32)
    return p


# ----------------------------------------------------------------------------
# FSSD forward
# ----------------------------------------------------------------------------
def fssd_forward(x_nchw, params, phase="eval"):
    x = jnp.transpose(x_nchw, (0, 2, 3, 1))          # NCHW -> NHWC
    sources = []

    for k, cfg in enumerate(BASE_CFG):
        wm, brow = params["base"][k]
        x = conv2d(x, wm, brow, cfg, relu=True)
        if k in BASE_SOURCES:
            sources.append(x)

    for k, cfg in enumerate(EXTRAS_CFG):
        wm, brow = params["extras"][k]
        x = conv2d(x, wm, brow, cfg, relu=True)
        if k % 2 == 1:
            sources.append(x)

    assert len(TRANSFORM_CFG) == len(sources)
    upsize = (sources[0].shape[1], sources[0].shape[2])

    transformed = []
    for k, cfg in enumerate(TRANSFORM_CFG):
        wm, brow, srow, hrow = params["transforms"][k]
        t = conv2d(sources[k], wm, brow, cfg, relu=True, scale=srow, shift=hrow)
        if k != 0:
            # TODO(synk): matches F.upsample(mode='bilinear', align_corners=False);
            # older torch defaults used align_corners=True.
            t = jax.image.resize(
                t.astype(jnp.float32),
                (t.shape[0], upsize[0], upsize[1], t.shape[3]),
                method="bilinear").astype(jnp.bfloat16)
        transformed.append(t)

    # torch.cat(dim=1) in NCHW == channel concat in NHWC; self.norm was applied
    # inside the transform kernels (eval-mode, exact).
    x = jnp.concatenate(transformed, axis=-1)

    pyramids = []
    for k, cfg in enumerate(PYRAMID_CFG):
        wm, brow = params["pyramids"][k]
        x = conv2d(x, wm, brow, cfg, relu=True)
        pyramids.append(x)

    if phase == "feature":
        return [jnp.transpose(p.astype(jnp.float32), (0, 3, 1, 2)) for p in pyramids]

    w_all, b_all = params["heads"]
    loc, conf = head_convs(pyramids, w_all, b_all, params["softmax_g"],
                           apply_softmax=(phase == "eval"))
    B = loc.shape[0]
    if phase == "eval":
        # conf already softmaxed per anchor inside the head kernel.
        return loc.reshape(B, -1, 4), conf.reshape(-1, NUM_CLASSES)
    return loc.reshape(B, -1, 4), conf.reshape(B, -1, NUM_CLASSES)


# ----------------------------------------------------------------------------
# Pure-JAX reference for a single conv (used only for the in-script unit check)
# ----------------------------------------------------------------------------
def _reference_conv(x, w, b, stride, pad, relu):
    out = lax.conv_general_dilated(
        x, w, window_strides=(stride, stride),
        padding=((pad, pad), (pad, pad)),
        dimension_numbers=("NHWC", "HWIO", "NHWC"))
    out = out + b.astype(jnp.float32)
    return jnp.maximum(out, 0.0) if relu else out


# ----------------------------------------------------------------------------
if __name__ == "__main__":
    key = jax.random.PRNGKey(0)
    k_param, k_input = jax.random.split(key)

    # Unit check of the direct-conv kernel (stride-1 and stride-2/s2d paths)
    # against lax.conv on odd spatial sizes.
    kc = jax.random.split(k_input, 3)
    for cfg in [(3, 3, 8, 16, 1, 1), (3, 3, 8, 16, 2, 1)]:
        kh, kw, ci, co, s, pad = cfg
        xt = jax.random.normal(kc[0], (2, 13, 11, ci), jnp.float32).astype(jnp.bfloat16)
        wt = 0.1 * jax.random.normal(kc[1], (kh, kw, ci, co), jnp.float32)
        bt = 0.01 * jax.random.normal(kc[2], (co,), jnp.float32)
        wm_t, brow_t = _prep_conv(wt, bt, cfg)
        got = conv2d(xt, wm_t, brow_t, cfg, relu=True, out_dtype=jnp.float32)
        want = _reference_conv(xt.astype(jnp.float32),
                               wt.astype(jnp.bfloat16).astype(jnp.float32),
                               bt, s, pad, True)
        assert got.shape == want.shape, (got.shape, want.shape)
        assert bool(jnp.allclose(got, want, atol=2e-2, rtol=2e-2)), \
            f"conv kernel mismatch for cfg={cfg}"

    raw = make_params(k_param)
    params = prepare_params(raw)           # one-time fold / rearrange / bf16 cast
    x = jax.random.normal(k_input, (2, 3, 16, 16), jnp.float32)  # NCHW

    fwd = jax.jit(functools.partial(fssd_forward, phase="eval"))
    loc, conf = fwd(x, params)
    jax.block_until_ready((loc, conf))

    # sanity: (8x8 + 4x4 + 2x2) locations * 4 anchors = 336 priors
    assert loc.shape == (2, 336, 4), loc.shape
    assert conf.shape == (2 * 336, NUM_CLASSES), conf.shape
    assert bool(jnp.all(jnp.isfinite(loc))) and bool(jnp.all(jnp.isfinite(conf)))
    assert bool(jnp.allclose(jnp.sum(conf, axis=-1), 1.0, atol=1e-5))
    print("KERNEL_OK")
</pallas_src>

<mosaic_0001>
module attributes {stable_mosaic.version = 11 : i64} {
  func.func @_conv_tap_kernel(%arg0: i32, %arg1: i32, %arg2: memref<1x208x8xbf16, #tpu.memory_space<vmem>>, %arg3: memref<9x8x128xbf16, #tpu.memory_space<vmem>>, %arg4: memref<1x128xf32, #tpu.memory_space<vmem>>, %arg5: memref<1x176x16xf32, #tpu.memory_space<vmem>>) attributes {dimension_semantics = [#tpu.dimension_semantics<parallel>, #tpu.dimension_semantics<parallel>], iteration_bounds = array<i64: 2, 1>, scalar_prefetch = 0 : i64, scratch_operands = 0 : i64, tpu.core_type = #tpu.core_type<tc>, window_params = [{transform_indices = @transform_0, window_bounds = array<i64: 1, 208, 8>}, {pipeline_mode = #tpu.pipeline_mode<synchronous>, transform_indices = @transform_1, window_bounds = array<i64: 9, 8, 128>}, {pipeline_mode = #tpu.pipeline_mode<synchronous>, transform_indices = @transform_2, window_bounds = array<i64: 1, 128>}, {transform_indices = @transform_3, window_bounds = array<i64: 1, 176, 16>}]} {
    %cst = arith.constant 0.000000e+00 : f32
    %0 = vector.broadcast %cst : f32 to vector<176x128xf32>
    %c0 = arith.constant 0 : index
    %c0_0 = arith.constant 0 : index
    %c0_1 = arith.constant 0 : index
    %1 = vector.load %arg2[%c0, %c0_0, %c0_1] : memref<1x208x8xbf16, #tpu.memory_space<vmem>>, vector<1x176x8xbf16>
    %2 = vector.shape_cast %1 : vector<1x176x8xbf16> to vector<176x8xbf16>
    %c0_2 = arith.constant 0 : index
    %c0_3 = arith.constant 0 : index
    %c0_4 = arith.constant 0 : index
    %3 = vector.load %arg3[%c0_2, %c0_3, %c0_4] : memref<9x8x128xbf16, #tpu.memory_space<vmem>>, vector<1x8x128xbf16>
    %4 = vector.shape_cast %3 : vector<1x8x128xbf16> to vector<8x128xbf16>
    %cst_5 = arith.constant dense<0.000000e+00> : vector<176x128xf32>
    %5 = tpu.matmul %2, %4, %cst_5 {dimension_numbers = #tpu.dot_dimension_numbers<[1], [0], [0], [1], [0, 0, 1, 1], [], []>} : vector<176x8xbf16>, vector<8x128xbf16>, vector<176x128xf32> -> vector<176x128xf32>
    %6 = arith.addf %0, %5 : vector<176x128xf32>
    %c0_6 = arith.constant 0 : index
    %c1 = arith.constant 1 : index
    %c0_7 = arith.constant 0 : index
    %7 = vector.load %arg2[%c0_6, %c1, %c0_7] : memref<1x208x8xbf16, #tpu.memory_space<vmem>>, vector<1x176x8xbf16>
    %8 = vector.shape_cast %7 : vector<1x176x8xbf16> to vector<176x8xbf16>
    %c1_8 = arith.constant 1 : index
    %c0_9 = arith.constant 0 : index
    %c0_10 = arith.constant 0 : index
    %9 = vector.load %arg3[%c1_8, %c0_9, %c0_10] : memref<9x8x128xbf16, #tpu.memory_space<vmem>>, vector<1x8x128xbf16>
    %10 = vector.shape_cast %9 : vector<1x8x128xbf16> to vector<8x128xbf16>
    %cst_11 = arith.constant dense<0.000000e+00> : vector<176x128xf32>
    %11 = tpu.matmul %8, %10, %cst_11 {dimension_numbers = #tpu.dot_dimension_numbers<[1], [0], [0], [1], [0, 0, 1, 1], [], []>} : vector<176x8xbf16>, vector<8x128xbf16>, vector<176x128xf32> -> vector<176x128xf32>
    %12 = arith.addf %6, %11 : vector<176x128xf32>
    %c0_12 = arith.constant 0 : index
    %c2 = arith.constant 2 : index
    %c0_13 = arith.constant 0 : index
    %13 = vector.load %arg2[%c0_12, %c2, %c0_13] : memref<1x208x8xbf16, #tpu.memory_space<vmem>>, vector<1x176x8xbf16>
    %14 = vector.shape_cast %13 : vector<1x176x8xbf16> to vector<176x8xbf16>
    %c2_14 = arith.constant 2 : index
    %c0_15 = arith.constant 0 : index
    %c0_16 = arith.constant 0 : index
    %15 = vector.load %arg3[%c2_14, %c0_15, %c0_16] : memref<9x8x128xbf16, #tpu.memory_space<vmem>>, vector<1x8x128xbf16>
    %16 = vector.shape_cast %15 : vector<1x8x128xbf16> to vector<8x128xbf16>
    %cst_17 = arith.constant dense<0.000000e+00> : vector<176x128xf32>
    %17 = tpu.matmul %14, %16, %cst_17 {dimension_numbers = #tpu.dot_dimension_numbers<[1], [0], [0], [1], [0, 0, 1, 1], [], []>} : vector<176x8xbf16>, vector<8x128xbf16>, vector<176x128xf32> -> vector<176x128xf32>
    %18 = arith.addf %12, %17 : vector<176x128xf32>
    %c0_18 = arith.constant 0 : index
    %c13 = arith.constant 13 : index
    %c0_19 = arith.constant 0 : index
    %19 = vector.load %arg2[%c0_18, %c13, %c0_19] : memref<1x208x8xbf16, #tpu.memory_space<vmem>>, vector<1x176x8xbf16>
    %20 = vector.shape_cast %19 : vector<1x176x8xbf16> to vector<176x8xbf16>
    %c3 = arith.constant 3 : index
    %c0_20 = arith.constant 0 : index
    %c0_21 = arith.constant 0 : index
    %21 = vector.load %arg3[%c3, %c0_20, %c0_21] : memref<9x8x128xbf16, #tpu.memory_space<vmem>>, vector<1x8x128xbf16>
    %22 = vector.shape_cast %21 : vector<1x8x128xbf16> to vector<8x128xbf16>
    %cst_22 = arith.constant dense<0.000000e+00> : vector<176x128xf32>
    %23 = tpu.matmul %20, %22, %cst_22 {dimension_numbers = #tpu.dot_dimension_numbers<[1], [0], [0], [1], [0, 0, 1, 1], [], []>} : vector<176x8xbf16>, vector<8x128xbf16>, vector<176x128xf32> -> vector<176x128xf32>
    %24 = arith.addf %18, %23 : vector<176x128xf32>
    %c0_23 = arith.constant 0 : index
    %c14 = arith.constant 14 : index
    %c0_24 = arith.constant 0 : index
    %25 = vector.load %arg2[%c0_23, %c14, %c0_24] : memref<1x208x8xbf16, #tpu.memory_space<vmem>>, vector<1x176x8xbf16>
    %26 = vector.shape_cast %25 : vector<1x176x8xbf16> to vector<176x8xbf16>
    %c4 = arith.constant 4 : index
    %c0_25 = arith.constant 0 : index
    %c0_26 = arith.constant 0 : index
    %27 = vector.load %arg3[%c4, %c0_25, %c0_26] : memref<9x8x128xbf16, #tpu.memory_space<vmem>>, vector<1x8x128xbf16>
    %28 = vector.shape_cast %27 : vector<1x8x128xbf16> to vector<8x128xbf16>
    %cst_27 = arith.constant dense<0.000000e+00> : vector<176x128xf32>
    %29 = tpu.matmul %26, %28, %cst_27 {dimension_numbers = #tpu.dot_dimension_numbers<[1], [0], [0], [1], [0, 0, 1, 1], [], []>} : vector<176x8xbf16>, vector<8x128xbf16>, vector<176x128xf32> -> vector<176x128xf32>
    %30 = arith.addf %24, %29 : vector<176x128xf32>
    %c0_28 = arith.constant 0 : index
    %c15 = arith.constant 15 : index
    %c0_29 = arith.constant 0 : index
    %31 = vector.load %arg2[%c0_28, %c15, %c0_29] : memref<1x208x8xbf16, #tpu.memory_space<vmem>>, vector<1x176x8xbf16>
    %32 = vector.shape_cast %31 : vector<1x176x8xbf16> to vector<176x8xbf16>
    %c5 = arith.constant 5 : index
    %c0_30 = arith.constant 0 : index
    %c0_31 = arith.constant 0 : index
    %33 = vector.load %arg3[%c5, %c0_30, %c0_31] : memref<9x8x128xbf16, #tpu.memory_space<vmem>>, vector<1x8x128xbf16>
    %34 = vector.shape_cast %33 : vector<1x8x128xbf16> to vector<8x128xbf16>
    %cst_32 = arith.constant dense<0.000000e+00> : vector<176x128xf32>
    %35 = tpu.matmul %32, %34, %cst_32 {dimension_numbers = #tpu.dot_dimension_numbers<[1], [0], [0], [1], [0, 0, 1, 1], [], []>} : vector<176x8xbf16>, vector<8x128xbf16>, vector<176x128xf32> -> vector<176x128xf32>
    %36 = arith.addf %30, %35 : vector<176x128xf32>
    %c0_33 = arith.constant 0 : index
    %c26 = arith.constant 26 : index
    %c0_34 = arith.constant 0 : index
    %37 = vector.load %arg2[%c0_33, %c26, %c0_34] : memref<1x208x8xbf16, #tpu.memory_space<vmem>>, vector<1x176x8xbf16>
    %38 = vector.shape_cast %37 : vector<1x176x8xbf16> to vector<176x8xbf16>
    %c6 = arith.constant 6 : index
    %c0_35 = arith.constant 0 : index
    %c0_36 = arith.constant 0 : index
    %39 = vector.load %arg3[%c6, %c0_35, %c0_36] : memref<9x8x128xbf16, #tpu.memory_space<vmem>>, vector<1x8x128xbf16>
    %40 = vector.shape_cast %39 : vector<1x8x128xbf16> to vector<8x128xbf16>
    %cst_37 = arith.constant dense<0.000000e+00> : vector<176x128xf32>
    %41 = tpu.matmul %38, %40, %cst_37 {dimension_numbers = #tpu.dot_dimension_numbers<[1], [0], [0], [1], [0, 0, 1, 1], [], []>} : vector<176x8xbf16>, vector<8x128xbf16>, vector<176x128xf32> -> vector<176x128xf32>
    %42 = arith.addf %36, %41 : vector<176x128xf32>
    %c0_38 = arith.constant 0 : index
    %c27 = arith.constant 27 : index
    %c0_39 = arith.constant 0 : index
    %43 = vector.load %arg2[%c0_38, %c27, %c0_39] : memref<1x208x8xbf16, #tpu.memory_space<vmem>>, vector<1x176x8xbf16>
    %44 = vector.shape_cast %43 : vector<1x176x8xbf16> to vector<176x8xbf16>
    %c7 = arith.constant 7 : index
    %c0_40 = arith.constant 0 : index
    %c0_41 = arith.constant 0 : index
    %45 = vector.load %arg3[%c7, %c0_40, %c0_41] : memref<9x8x128xbf16, #tpu.memory_space<vmem>>, vector<1x8x128xbf16>
    %46 = vector.shape_cast %45 : vector<1x8x128xbf16> to vector<8x128xbf16>
    %cst_42 = arith.constant dense<0.000000e+00> : vector<176x128xf32>
    %47 = tpu.matmul %44, %46, %cst_42 {dimension_numbers = #tpu.dot_dimension_numbers<[1], [0], [0], [1], [0, 0, 1, 1], [], []>} : vector<176x8xbf16>, vector<8x128xbf16>, vector<176x128xf32> -> vector<176x128xf32>
    %48 = arith.addf %42, %47 : vector<176x128xf32>
    %c0_43 = arith.constant 0 : index
    %c28 = arith.constant 28 : index
    %c0_44 = arith.constant 0 : index
    %49 = vector.load %arg2[%c0_43, %c28, %c0_44] : memref<1x208x8xbf16, #tpu.memory_space<vmem>>, vector<1x176x8xbf16>
    %50 = vector.shape_cast %49 : vector<1x176x8xbf16> to vector<176x8xbf16>
    %c8 = arith.constant 8 : index
    %c0_45 = arith.constant 0 : index
    %c0_46 = arith.constant 0 : index
    %51 = vector.load %arg3[%c8, %c0_45, %c0_46] : memref<9x8x128xbf16, #tpu.memory_space<vmem>>, vector<1x8x128xbf16>
    %52 = vector.shape_cast %51 : vector<1x8x128xbf16> to vector<8x128xbf16>
    %cst_47 = arith.constant dense<0.000000e+00> : vector<176x128xf32>
    %53 = tpu.matmul %50, %52, %cst_47 {dimension_numbers = #tpu.dot_dimension_numbers<[1], [0], [0], [1], [0, 0, 1, 1], [], []>} : vector<176x8xbf16>, vector<8x128xbf16>, vector<176x128xf32> -> vector<176x128xf32>
    %54 = arith.addf %48, %53 : vector<176x128xf32>
    %c0_48 = arith.constant 0 : index
    %c0_49 = arith.constant 0 : index
    %55 = vector.load %arg4[%c0_48, %c0_49] : memref<1x128xf32, #tpu.memory_space<vmem>>, vector<1x128xf32>
    %56 = vector.broadcast %55 : vector<1x128xf32> to vector<176x128xf32>
    %57 = arith.addf %54, %56 : vector<176x128xf32>
    %cst_50 = arith.constant 0.000000e+00 : f32
    %58 = vector.broadcast %cst_50 : f32 to vector<176x128xf32>
    %59 = arith.maximumf %57, %58 : vector<176x128xf32>
    %60 = vector.extract_strided_slice %59 {offsets = [0, 0], sizes = [176, 16], strides = [1, 1]} : vector<176x128xf32> to vector<176x16xf32>
    %c0_51 = arith.constant 0 : index
    %c0_52 = arith.constant 0 : index
    %c0_53 = arith.constant 0 : index
    %61 = vector.load %arg5[%c0_51, %c0_52, %c0_53] : memref<1x176x16xf32, #tpu.memory_space<vmem>>, vector<1x176x16xf32>
    %62 = vector.shape_cast %61 : vector<1x176x16xf32> to vector<176x16xf32>
    %63 = vector.shape_cast %60 : vector<176x16xf32> to vector<1x176x16xf32>
    tpu.vector_store %arg5[%c0_51, %c0_52, %c0_53], %63 {strides = array<i32>} : memref<1x176x16xf32, #tpu.memory_space<vmem>>, vector<1x176x16xf32>,
    return
  }
  func.func @transform_0(%arg0: i32, %arg1: i32) -> (i32, i32, i32) {
    %c0_i32 = arith.constant 0 : i32
    %c0_i32_0 = arith.constant 0 : i32
    %c0_i32_1 = arith.constant 0 : i32
    return %arg0, %c0_i32, %c0_i32_0 : i32, i32, i32
  }
  func.func @transform_1(%arg0: i32, %arg1: i32) -> (i32, i32, i32) {
    %c0_i32 = arith.constant 0 : i32
    %c0_i32_0 = arith.constant 0 : i32
    %c0_i32_1 = arith.constant 0 : i32
    %c0_i32_2 = arith.constant 0 : i32
    return %c0_i32, %c0_i32_0, %c0_i32_1 : i32, i32, i32
  }
  func.func @transform_2(%arg0: i32, %arg1: i32) -> (i32, i32) {
    %c0_i32 = arith.constant 0 : i32
    %c0_i32_0 = arith.constant 0 : i32
    %c0_i32_1 = arith.constant 0 : i32
    return %c0_i32, %c0_i32_0 : i32, i32
  }
  func.func @transform_3(%arg0: i32, %arg1: i32) -> (i32, i32, i32) {
    %c0_i32 = arith.constant 0 : i32
    %c0_i32_0 = arith.constant 0 : i32
    return %arg0, %arg1, %c0_i32 : i32, i32, i32
  }
}

</mosaic_0001>

<llo_original>
// kernel: tpu_custom_call.1
$region0: #{tpu_custom_call.1}
  #allocation0 [shape = 'u32[]', space=smem, size = 0x4, offset = 0x4, fixed_abs, tag = 'smem constant byte address 0x4 - core index']
  #allocation1 [shape = 'u32[72,128]{1,0:T(1,128)}', space=vmem, size = 0x9000, scoped, tag = 'internal scratch']
  %s0 = inlined_call_operand.vmem [shape: bf16[2,208,8], index: 0, kind: input, shape index: {}]
  %s1 = inlined_call_operand.vmem [shape: bf16[9,8,128], index: 1, kind: input, shape index: {}]
  %s2 = inlined_call_operand.vmem [shape: f32[1,128], index: 2, kind: input, shape index: {}]
  %s3 = inlined_call_operand.vmem [shape: f32[2,176,16], index: 3, kind: output, shape index: {}]
  %s4 = sld [smem:[#allocation0]]
  $region45: #{tpu_custom_call.1} parent=0
    _
  %s6 = ssub.s32 1, %s4
  %s7 = scalar_select 0, %s6, %s4
  loop: start=0, step=1, limit=4
  $region2: #{tpu_custom_call.1} parent=0 // loop_pre_header
    _
  $region3: #{tpu_custom_call.1} parent=0 // loop_header
    %s9 = sphi 0, %s13
    %p10 = scmp.ge.s32.totalorder %s9, 4
    %s16 = sphi 0, %s28
    %s17 = sphi 0, %s24
    %s18 = sphi 0, %s16
    %s19 = sphi 0, %s17
    %s20 = sphi 0, %s18
    %s21 = sphi 0, %s19
    %s31 = sphi 0, %s33
    %s34 = sphi 0, %s31
    %s35 = sphi 0, %s34
    %s51 = sphi 0, %s35
    %s55 = sphi 0, %s55
    %s57 = sphi 0, %s55
    %s58 = sphi 0, %s57
    %s72 = sphi 0, %s58
    %s76 = sphi 0, %s76
    %s78 = sphi 0, %s76
    %s79 = sphi 0, %s78
    %s93 = sphi 0, %s79
    %s101 = sphi 0, %s103
    %s104 = sphi 0, %s101
    %s105 = sphi 0, %s104
    %s121 = sphi 0, %s105
  $region4: #{tpu_custom_call.1} parent=0 // loop_header_branch
    %12 = sbr.rel (%p10) target = $region8
  $region5: #{tpu_custom_call.1} parent=0 // loop_body
    %s14 = ssub.s32 %s9, 1
    %s15 = ssub.s32 %s9, 2
    %s22 = sadd.s32 1, %s17
    %p23 = scmp.ge.s32.totalorder %s22, 1
    %s24 = scalar_select %p23, 0, %s22
    %s25 = sadd.s32 1, %s16
    %s26 = scalar_select %p23, %s25, %s16
    %p27 = scmp.ge.s32.totalorder %s26, 2
    %s28 = scalar_select %p27, 0, %s26
    %s29 = ssub.s32 %s16, %s28
    %p30 = scmp.eq.s32.totalorder %s29, 0
    %s32 = sadd.s32 %s31, 1
    %s33 = scalar_select %p30, %s31, %s32
    %p36 = pneg %p30
    %p37 = scmp.eq.s32.totalorder %s9, 1
    %p38 = por %p36, %p37
    %p39 = scmp.ne.s32.totalorder %s31, %s34
    %p40 = scmp.eq.s32.totalorder %s9, 0
    %p41 = por %p39, %p40
    %p42 = scmp.ne.s32.totalorder %s31, %s34
    %p43 = scmp.eq.s32.totalorder %s14, 1
    %p44 = por %p42, %p43
    %p45 = scmp.ne.s32.totalorder %s34, %s35
    %p46 = scmp.eq.s32.totalorder %s14, 0
    %p47 = por %p45, %p46
    %p48 = scmp.ne.s32.totalorder %s34, %s35
    %p49 = scmp.eq.s32.totalorder %s15, 1
    %p50 = por %p48, %p49
    %p52 = scmp.ne.s32.totalorder %s35, %s51
    %p53 = scmp.eq.s32.totalorder %s15, 0
    %p54 = por %p52, %p53
    %s56 = sadd.s32 %s55, 1
    %p59 = scmp.eq.s32.totalorder %s9, 1
    %p60 = scmp.ne.s32.totalorder %s55, %s57
    %p61 = scmp.eq.s32.totalorder %s9, 0
    %p62 = por %p60, %p61
    %p63 = scmp.ne.s32.totalorder %s55, %s57
    %p64 = scmp.eq.s32.totalorder %s14, 1
    %p65 = por %p63, %p64
    %p66 = scmp.ne.s32.totalorder %s57, %s58
    %p67 = scmp.eq.s32.totalorder %s14, 0
    %p68 = por %p66, %p67
    %p69 = scmp.ne.s32.totalorder %s57, %s58
    %p70 = scmp.eq.s32.totalorder %s15, 1
    %p71 = por %p69, %p70
    %p73 = scmp.ne.s32.totalorder %s58, %s72
    %p74 = scmp.eq.s32.totalorder %s15, 0
    %p75 = por %p73, %p74
    %s77 = sadd.s32 %s76, 1
    %p80 = scmp.eq.s32.totalorder %s9, 1
    %p81 = scmp.ne.s32.totalorder %s76, %s78
    %p82 = scmp.eq.s32.totalorder %s9, 0
    %p83 = por %p81, %p82
    %p84 = scmp.ne.s32.totalorder %s76, %s78
    %p85 = scmp.eq.s32.totalorder %s14, 1
    %p86 = por %p84, %p85
    %p87 = scmp.ne.s32.totalorder %s78, %s79
    %p88 = scmp.eq.s32.totalorder %s14, 0
    %p89 = por %p87, %p88
    %p90 = scmp.ne.s32.totalorder %s78, %s79
    %p91 = scmp.eq.s32.totalorder %s15, 1
    %p92 = por %p90, %p91
    %p94 = scmp.ne.s32.totalorder %s79, %s93
    %p95 = scmp.eq.s32.totalorder %s15, 0
    %p96 = por %p94, %p95
    %s97 = ssub.s32 %s16, %s28
    %s98 = ssub.s32 %s17, %s24
    %s99 = sor.u32 %s97, %s98
    %p100 = scmp.eq.s32.totalorder %s99, 0
    %s102 = sadd.s32 %s101, 1
    %s103 = scalar_select %p100, %s101, %s102
    %p106 = pneg %p100
    %p107 = scmp.eq.s32.totalorder %s9, 1
    %p108 = por %p106, %p107
    %p109 = scmp.ne.s32.totalorder %s101, %s104
    %p110 = scmp.eq.s32.totalorder %s9, 0
    %p111 = por %p109, %p110
    %p112 = scmp.ne.s32.totalorder %s101, %s104
    %p113 = scmp.eq.s32.totalorder %s14, 1
    %p114 = por %p112, %p113
    %p115 = scmp.ne.s32.totalorder %s104, %s105
    %p116 = scmp.eq.s32.totalorder %s14, 0
    %p117 = por %p115, %p116
    %p118 = scmp.ne.s32.totalorder %s104, %s105
    %p119 = scmp.eq.s32.totalorder %s15, 1
    %p120 = por %p118, %p119
    %p122 = scmp.ne.s32.totalorder %s105, %s121
    %p123 = scmp.eq.s32.totalorder %s15, 0
    %p124 = por %p122, %p123
    %p125 = scmp.le.s32.totalorder 1, %s9
    %p126 = scmp.lt.s32.totalorder %s9, 3
    %p127 = pnand %p125, %p126
    %p128 = pneg %p127
    // Predicated region
    $region9: #{tpu_custom_call.1} parent=5 // pred_check
      _
    $region10: #{tpu_custom_call.1} parent=5 // pred_check_branch
      %130 = sbr.rel (%p127) target = $region12
    $region11: #{tpu_custom_call.1} parent=5 // pred_region
      %s131 = ssub.s32 %s9, 1
      // Predicated region
      $region13: #{tpu_custom_call.1} parent=11 // pred_check
        %p132 = pneg %p68
      $region14: #{tpu_custom_call.1} parent=11 // pred_check_branch
        %134 = sbr.rel (%p132) target = $region16
      $region15: #{tpu_custom_call.1} parent=11 // pred_region
        _
      $region16: #{tpu_custom_call.1} parent=11 // pred_fallthru
        _
      // Predicated region
      $region17: #{tpu_custom_call.1} parent=11 // pred_check
        %p135 = pneg %p89
      $region18: #{tpu_custom_call.1} parent=11 // pred_check_branch
        %137 = sbr.rel (%p135) target = $region20
      $region19: #{tpu_custom_call.1} parent=11 // pred_region
        _
      $region20: #{tpu_custom_call.1} parent=11 // pred_fallthru
        _
    $region12: #{tpu_custom_call.1} parent=5 // pred_fallthru
      _
    %p138 = scmp.lt.s32.totalorder %s9, 2
    // Predicated region
    $region21: #{tpu_custom_call.1} parent=5 // pred_check
      %p139 = pneg %p138
    $region22: #{tpu_custom_call.1} parent=5 // pred_check_branch
      %141 = sbr.rel (%p139) target = $region24
    $region23: #{tpu_custom_call.1} parent=5 // pred_region
      // Predicated region
      $region25: #{tpu_custom_call.1} parent=23 // pred_check
        %p142 = pneg %p41
      $region26: #{tpu_custom_call.1} parent=23 // pred_check_branch
        %144 = sbr.rel (%p142) target = $region28
      $region27: #{tpu_custom_call.1} parent=23 // pred_region
        %p145 = scmp.lt.s32.totalorder %s16, 1
        %s146 = scalar_select %p145, %s16, 1
        %s147 = smul.addr %s146, 26
        %s148 = smul.addr %s147, 4
        %s149 = scalar_lea.vmem %s0, %s148
      $region28: #{tpu_custom_call.1} parent=23 // pred_fallthru
        _
    $region24: #{tpu_custom_call.1} parent=5 // pred_fallthru
      _
    %p150 = scmp.le.s32.totalorder 1, %s9
    %p151 = scmp.lt.s32.totalorder %s9, 3
    %p152 = pnand %p150, %p151
    %p153 = pneg %p152
    // Predicated region
    $region29: #{tpu_custom_call.1} parent=5 // pred_check
      _
    $region30: #{tpu_custom_call.1} parent=5 // pred_check_branch
      %155 = sbr.rel (%p152) target = $region32
    $region31: #{tpu_custom_call.1} parent=5 // pred_region
      %s156 = ssub.s32 %s9, 1
      %p157 = scmp.lt.s32.totalorder %s18, 1
      %s158 = scalar_select %p157, %s18, 1
      %s159 = smul.addr %s158, 26
      %s160 = smul.addr %s159, 4
      %s161 = scalar_lea.vmem %s0, %s160
      %p162 = pneg %p47
      %p163 = pneg %p44
      %p164 = pneg %p68
      %p165 = pneg %p65
      %p166 = pneg %p89
      %p167 = pneg %p86
      %p168 = pneg %p117
      %p169 = pneg %p114
      %s170 = smul.u32 22, %s19
      %p171 = scmp.lt.s32.totalorder %s18, 1
      %s172 = scalar_select %p171, %s18, 1
      %p173 = scmp.lt.s32.totalorder %s170, 21
      %s174 = scalar_select %p173, %s170, 21
      %s175 = smul.addr %s172, 22
      %s176 = sadd.s32 %s174, %s175
      %s177 = smul.addr %s176, 8
      %s178 = scalar_lea.vmem %s3, %s177
      %p179 = scmp.lt.s32.totalorder %s18, 1
      %s180 = scalar_select %p179, %s18, 1
      %s181 = smul.addr %s180, 26
      %s182 = smul.addr %s181, 4
      %s183 = scalar_lea.vmem %s0, %s182
      %s184 = smul.u32 22, %s19
      %p185 = scmp.lt.s32.totalorder %s18, 1
      %s186 = scalar_select %p185, %s18, 1
      %p187 = scmp.lt.s32.totalorder %s184, 21
      %s188 = scalar_select %p187, %s184, 21
      %s189 = smul.addr %s186, 22
      %s190 = sadd.s32 %s188, %s189
      %s191 = smul.addr %s190, 8
      %s192 = scalar_lea.vmem %s3, %s191
      %s193 = smul.u32 22, %s19
      %v195 = vld [vmem:[%s183] sm:$0xf]
      %v196 = vld [vmem:[%s183 + $0x4] sm:$0xf]
      %v197 = vld [vmem:[%s183 + $0x8] sm:$0xf]
      %v198 = vld [vmem:[%s183 + $0xc] sm:$0xf]
      %v199 = vld [vmem:[%s183 + $0x10] sm:$0xf]
      %v200 = vld [vmem:[%s183 + $0x14] sm:$0xf]
      %v201 = vld [vmem:[%s183 + $0x18] sm:$0xf]
      %v202 = vld [vmem:[%s183 + $0x1c] sm:$0xf]
      %v203 = vld [vmem:[%s183 + $0x20] sm:$0xf]
      %v204 = vld [vmem:[%s183 + $0x24] sm:$0xf]
      %v205 = vld [vmem:[%s183 + $0x28] sm:$0xf]
      %v206 = vld [vmem:[%s183 + $0x2c] sm:$0xf]
      %v207 = vld [vmem:[%s183 + $0x30] sm:$0xf]
      %v208 = vld [vmem:[%s183 + $0x34] sm:$0xf]
      %v209 = vld [vmem:[%s183 + $0x38] sm:$0xf]
      %v210 = vld [vmem:[%s183 + $0x3c] sm:$0xf]
      %v211 = vld [vmem:[%s183 + $0x40] sm:$0xf]
      %v212 = vld [vmem:[%s183 + $0x44] sm:$0xf]
      %v213 = vld [vmem:[%s183 + $0x48] sm:$0xf]
      %v214 = vld [vmem:[%s183 + $0x4c] sm:$0xf]
      %v215 = vld [vmem:[%s183 + $0x50] sm:$0xf]
      %v216 = vld [vmem:[%s183 + $0x54] sm:$0xf]
      %v217 = vld [vmem:[%s1] sm:$0xf]
      %v218 = vld [vmem:[%s183 + $0x58] sm:$0x1]
      %s219 = scalar_lea.vmem %s1, 4
      %v220 = vld [vmem:[%s219] sm:$0xf]
      %v244 = vunpack.c.l.b16 %v195
      %v245 = vunpack.c.l.b16 %v196
      %v246 = vunpack.c.l.b16 %v197
      %v247 = vunpack.c.l.b16 %v198
      %v248 = vunpack.c.l.b16 %v199
      %v249 = vunpack.c.l.b16 %v200
      %v250 = vunpack.c.l.b16 %v201
      %v251 = vunpack.c.l.b16 %v202
      %v252 = vunpack.c.l.b16 %v203
      %v253 = vunpack.c.l.b16 %v204
      %v254 = vunpack.c.l.b16 %v205
      %v255 = vunpack.c.l.b16 %v206
      %v256 = vunpack.c.l.b16 %v207
      %v257 = vunpack.c.l.b16 %v208
      %v258 = vunpack.c.l.b16 %v209
      %v259 = vunpack.c.l.b16 %v210
      %v260 = vunpack.c.l.b16 %v211
      %v261 = vunpack.c.l.b16 %v212
      %v262 = vunpack.c.l.b16 %v213
      %v263 = vunpack.c.l.b16 %v214
      %v264 = vunpack.c.l.b16 %v215
      %v265 = vunpack.c.l.b16 %v216
      %v266 = vunpack.c.l.b16 %v218
      %v267 = vpack.c.b16 %v245, %v244
      %v268 = vpack.c.b16 %v247, %v246
      %v269 = vpack.c.b16 %v249, %v248
      %v270 = vpack.c.b16 %v251, %v250
      %v271 = vpack.c.b16 %v253, %v252
      %v272 = vpack.c.b16 %v255, %v254
      %v273 = vpack.c.b16 %v257, %v256
      %v274 = vpack.c.b16 %v259, %v258
      %v275 = vpack.c.b16 %v261, %v260
      %v276 = vpack.c.b16 %v263, %v262
      %v277 = vpack.c.b16 %v265, %v264
      %v278 = vpack.c.b16 %v266, %v266
      %vm279 = vsmask.f32 7424
      %v281 = vshrl.u32 %v267, 16
      %v283 = vshll.u32 %v267, 16
      %v285 = vrot.slane %v283, 1
      %v286 = vor.u32 %v281, %v285
      %v288 = vshll.u32 %v268, 16
      %v290 = vrot.slane %v288, 1
      %v291 = vsel %vm279, %v286, %v290
      %v292 = vshrl.u32 %v268, 16
      %v294 = vor.u32 %v292, %v290
      %v296 = vshll.u32 %v269, 16
      %v298 = vrot.slane %v296, 1
      %v299 = vsel %vm279, %v294, %v298
      %v300 = vshrl.u32 %v269, 16
      %v302 = vor.u32 %v300, %v298
      %v304 = vshll.u32 %v270, 16
      %v306 = vrot.slane %v304, 1
      %v307 = vsel %vm279, %v302, %v306
      %v308 = vshrl.u32 %v270, 16
      %v310 = vor.u32 %v308, %v306
      %v312 = vshll.u32 %v271, 16
      %v314 = vrot.slane %v312, 1
      %v315 = vsel %vm279, %v310, %v314
      %v316 = vshrl.u32 %v271, 16
      %v318 = vor.u32 %v316, %v314
      %v320 = vshll.u32 %v272, 16
      %v322 = vrot.slane %v320, 1
      %v323 = vsel %vm279, %v318, %v322
      %v324 = vshrl.u32 %v272, 16
      %v326 = vor.u32 %v324, %v322
      %v328 = vshll.u32 %v273, 16
      %v330 = vrot.slane %v328, 1
      %v331 = vsel %vm279, %v326, %v330
      %v332 = vshrl.u32 %v273, 16
      %v334 = vor.u32 %v332, %v330
      %v336 = vshll.u32 %v274, 16
      %v338 = vrot.slane %v336, 1
      %v339 = vsel %vm279, %v334, %v338
      %v340 = vshrl.u32 %v274, 16
      %v342 = vor.u32 %v340, %v338
      %v344 = vshll.u32 %v275, 16
      %v346 = vrot.slane %v344, 1
      %v347 = vsel %vm279, %v342, %v346
      %v348 = vshrl.u32 %v275, 16
      %v350 = vor.u32 %v348, %v346
      %v352 = vshll.u32 %v276, 16
      %v354 = vrot.slane %v352, 1
      %v355 = vsel %vm279, %v350, %v354
      %v356 = vshrl.u32 %v276, 16
      %v358 = vor.u32 %v356, %v354
      %v360 = vshll.u32 %v277, 16
      %v362 = vrot.slane %v360, 1
      %v363 = vsel %vm279, %v358, %v362
      %v364 = vshrl.u32 %v277, 16
      %v366 = vor.u32 %v364, %v362
      %v368 = vshll.u32 %v278, 16
      %v370 = vrot.slane %v368, 1
      %v371 = vsel %vm279, %v366, %v370
      %vm372 = vcmask 64512
      %v374 = vsel %vm372, %v291, 0
      %v377 = vsel %vm372, %v299, 0
      %v380 = vsel %vm372, %v307, 0
      %v383 = vsel %vm372, %v315, 0
      %v386 = vsel %vm372, %v323, 0
      %v389 = vsel %vm372, %v331, 0
      %v392 = vsel %vm372, %v339, 0
      %v395 = vsel %vm372, %v347, 0
      %v398 = vsel %vm372, %v355, 0
      %v401 = vsel %vm372, %v363, 0
      %v404 = vsel %vm372, %v371, 0
      %vm406 = vcmask 1043456
      %v408 = vsel %vm406, %v220, 0
      %410 = vmatpush.bf16.msra.mxu0 0
      %411 = vmatpush.bf16.msra.mxu0 0
      %412 = vmatpush.bf16.msra.mxu0 0
      %413 = vmatpush.bf16.msra.mxu0 0
      %414 = vmatpush.bf16.msra.mxu0 0
      %415 = vmatpush.bf16.msra.mxu0 0
      %416 = vmatpush.bf16.msra.mxu0 0
      %417 = vmatpush.bf16.msra.mxu0 %v408
      %418 = vmatmul.bf16.gmra.mxu0 %v374
      %v419 = vpop.f32.mrf.mxu0
      %v420 = vadd.f32 0.0, %v419
      %v421 = vpop.f32.mrf.mxu0
      %v422 = vadd.f32 0.0, %v421
      %423 = vmatmul.bf16.gmra.mxu0 %v377
      %v424 = vpop.f32.mrf.mxu0
      %v425 = vadd.f32 0.0, %v424
      %v426 = vpop.f32.mrf.mxu0
      %v427 = vadd.f32 0.0, %v426
      %428 = vmatmul.bf16.gmra.mxu0 %v380
      %v429 = vpop.f32.mrf.mxu0
      %v430 = vadd.f32 0.0, %v429
      %v431 = vpop.f32.mrf.mxu0
      %v432 = vadd.f32 0.0, %v431
      %433 = vmatmul.bf16.gmra.mxu0 %v383
      %v434 = vpop.f32.mrf.mxu0
      %v435 = vadd.f32 0.0, %v434
      %v436 = vpop.f32.mrf.mxu0
      %v437 = vadd.f32 0.0, %v436
      %438 = vmatmul.bf16.gmra.mxu0 %v386
      %v439 = vpop.f32.mrf.mxu0
      %v440 = vadd.f32 0.0, %v439
      %v441 = vpop.f32.mrf.mxu0
      %v442 = vadd.f32 0.0, %v441
      %443 = vmatmul.bf16.gmra.mxu0 %v389
      %v444 = vpop.f32.mrf.mxu0
      %v445 = vadd.f32 0.0, %v444
      %v446 = vpop.f32.mrf.mxu0
      %v447 = vadd.f32 0.0, %v446
      %448 = vmatmul.bf16.gmra.mxu0 %v392
      %v449 = vpop.f32.mrf.mxu0
      %v450 = vadd.f32 0.0, %v449
      %v451 = vpop.f32.mrf.mxu0
      %v452 = vadd.f32 0.0, %v451
      %453 = vmatmul.bf16.gmra.mxu0 %v395
      %v454 = vpop.f32.mrf.mxu0
      %v455 = vadd.f32 0.0, %v454
      %v456 = vpop.f32.mrf.mxu0
      %v457 = vadd.f32 0.0, %v456
      %458 = vmatmul.bf16.gmra.mxu0 %v398
      %v459 = vpop.f32.mrf.mxu0
      %v460 = vadd.f32 0.0, %v459
      %v461 = vpop.f32.mrf.mxu0
      %v462 = vadd.f32 0.0, %v461
      %463 = vmatmul.bf16.gmra.mxu0 %v401
      %v464 = vpop.f32.mrf.mxu0
      %v465 = vadd.f32 0.0, %v464
      %v466 = vpop.f32.mrf.mxu0
      %v467 = vadd.f32 0.0, %v466
      %468 = vmatmul.bf16.gmra.mxu0 %v404
      %v469 = vpop.f32.mrf.mxu0
      %v470 = vadd.f32 0.0, %v469
      %v471 = vpop.f32.mrf.mxu0
      %v472 = vadd.f32 0.0, %v471
      %473 = vdwg.mxu0
      %v474 = vsel %vm372, %v267, 0
      %v476 = vsel %vm372, %v268, 0
      %v478 = vsel %vm372, %v269, 0
      %v480 = vsel %vm372, %v270, 0
      %v482 = vsel %vm372, %v271, 0
      %v484 = vsel %vm372, %v272, 0
      %v486 = vsel %vm372, %v273, 0
      %v488 = vsel %vm372, %v274, 0
      %v490 = vsel %vm372, %v275, 0
      %v492 = vsel %vm372, %v276, 0
      %v494 = vsel %vm372, %v277, 0
      %v497 = vsel %vm406, %v217, 0
      %499 = vmatpush.bf16.msra.mxu0 0
      %500 = vmatpush.bf16.msra.mxu0 0
      %501 = vmatpush.bf16.msra.mxu0 0
      %502 = vmatpush.bf16.msra.mxu0 0
      %503 = vmatpush.bf16.msra.mxu0 0
      %504 = vmatpush.bf16.msra.mxu0 0
      %505 = vmatpush.bf16.msra.mxu0 0
      %506 = vmatpush.bf16.msra.mxu0 %v497
      %507 = vmatmul.bf16.gmra.mxu0 %v474
      %v508 = vpop.f32.mrf.mxu0
      %v509 = vadd.f32 %v420, %v508
      %v510 = vpop.f32.mrf.mxu0
      %v511 = vadd.f32 %v422, %v510
      %512 = vmatmul.bf16.gmra.mxu0 %v476
      %v513 = vpop.f32.mrf.mxu0
      %v514 = vadd.f32 %v425, %v513
      %v515 = vpop.f32.mrf.mxu0
      %v516 = vadd.f32 %v427, %v515
      %517 = vmatmul.bf16.gmra.mxu0 %v478
      %v518 = vpop.f32.mrf.mxu0
      %v519 = vadd.f32 %v430, %v518
      %v520 = vpop.f32.mrf.mxu0
      %v521 = vadd.f32 %v432, %v520
      %522 = vmatmul.bf16.gmra.mxu0 %v480
      %v523 = vpop.f32.mrf.mxu0
      %v524 = vadd.f32 %v435, %v523
      %v525 = vpop.f32.mrf.mxu0
      %v526 = vadd.f32 %v437, %v525
      %527 = vmatmul.bf16.gmra.mxu0 %v482
      %v528 = vpop.f32.mrf.mxu0
      %v529 = vadd.f32 %v440, %v528
      %v530 = vpop.f32.mrf.mxu0
      %v531 = vadd.f32 %v442, %v530
      %532 = vmatmul.bf16.gmra.mxu0 %v484
      %v533 = vpop.f32.mrf.mxu0
      %v534 = vadd.f32 %v445, %v533
      %v535 = vpop.f32.mrf.mxu0
      %v536 = vadd.f32 %v447, %v535
      %537 = vmatmul.bf16.gmra.mxu0 %v486
      %v538 = vpop.f32.mrf.mxu0
      %v539 = vadd.f32 %v450, %v538
      %v540 = vpop.f32.mrf.mxu0
      %v541 = vadd.f32 %v452, %v540
      %542 = vmatmul.bf16.gmra.mxu0 %v488
      %v543 = vpop.f32.mrf.mxu0
      %v544 = vadd.f32 %v455, %v543
      %v545 = vpop.f32.mrf.mxu0
      %v546 = vadd.f32 %v457, %v545
      %547 = vmatmul.bf16.gmra.mxu0 %v490
      %v548 = vpop.f32.mrf.mxu0
      %v549 = vadd.f32 %v460, %v548
      %v550 = vpop.f32.mrf.mxu0
      %v551 = vadd.f32 %v462, %v550
      %552 = vmatmul.bf16.gmra.mxu0 %v492
      %v553 = vpop.f32.mrf.mxu0
      %v554 = vadd.f32 %v465, %v553
      %v555 = vpop.f32.mrf.mxu0
      %v556 = vadd.f32 %v467, %v555
      %557 = vmatmul.bf16.gmra.mxu0 %v494
      %v558 = vpop.f32.mrf.mxu0
      %v559 = vadd.f32 %v470, %v558
      %v560 = vpop.f32.mrf.mxu0
      %v561 = vadd.f32 %v472, %v560
      %562 = vdwg.mxu0
      %v563 = vld [vmem:[%s183] sm:$0xe]
      %s564 = scalar_lea.vmem %s1, 8
      %v565 = vld [vmem:[%s564] sm:$0xf]
      %v567 = vunpack.c.l.b16 %v563
      %v568 = vpack.c.b16 %v245, %v567
      %vm569 = vcmask 1046528
      %v570 = vrot.slane %v568, 1
      %v571 = vrot.slane %v268, 1
      %v572 = vsel %vm569, %v570, %v571
      %v573 = vrot.slane %v269, 1
      %v574 = vsel %vm569, %v571, %v573
      %v575 = vrot.slane %v270, 1
      %v576 = vsel %vm569, %v573, %v575
      %v577 = vrot.slane %v271, 1
      %v578 = vsel %vm569, %v575, %v577
      %v579 = vrot.slane %v272, 1
      %v580 = vsel %vm569, %v577, %v579
      %v581 = vrot.slane %v273, 1
      %v582 = vsel %vm569, %v579, %v581
      %v583 = vrot.slane %v274, 1
      %v584 = vsel %vm569, %v581, %v583
      %v585 = vrot.slane %v275, 1
      %v586 = vsel %vm569, %v583, %v585
      %v587 = vrot.slane %v276, 1
      %v588 = vsel %vm569, %v585, %v587
      %v589 = vrot.slane %v277, 1
      %v590 = vsel %vm569, %v587, %v589
      %v591 = vrot.slane %v278, 1
      %v592 = vsel %vm569, %v589, %v591
      %v594 = vsel %vm372, %v572, 0
      %v597 = vsel %vm372, %v574, 0
      %v600 = vsel %vm372, %v576, 0
      %v603 = vsel %vm372, %v578, 0
      %v606 = vsel %vm372, %v580, 0
      %v609 = vsel %vm372, %v582, 0
      %v612 = vsel %vm372, %v584, 0
      %v615 = vsel %vm372, %v586, 0
      %v618 = vsel %vm372, %v588, 0
      %v621 = vsel %vm372, %v590, 0
      %v624 = vsel %vm372, %v592, 0
      %v627 = vsel %vm406, %v565, 0
      %629 = vmatpush.bf16.msra.mxu0 0
      %630 = vmatpush.bf16.msra.mxu0 0
      %631 = vmatpush.bf16.msra.mxu0 0
      %632 = vmatpush.bf16.msra.mxu0 0
      %633 = vmatpush.bf16.msra.mxu0 0
      %634 = vmatpush.bf16.msra.mxu0 0
      %635 = vmatpush.bf16.msra.mxu0 0
      %636 = vmatpush.bf16.msra.mxu0 %v627
      %637 = vmatmul.bf16.gmra.mxu0 %v594
      %v638 = vpop.f32.mrf.mxu0
      %v639 = vadd.f32 0.0, %v638
      %v640 = vpop.f32.mrf.mxu0
      %v641 = vadd.f32 0.0, %v640
      %642 = vmatmul.bf16.gmra.mxu0 %v597
      %v643 = vpop.f32.mrf.mxu0
      %v644 = vadd.f32 0.0, %v643
      %v645 = vpop.f32.mrf.mxu0
      %v646 = vadd.f32 0.0, %v645
      %647 = vmatmul.bf16.gmra.mxu0 %v600
      %v648 = vpop.f32.mrf.mxu0
      %v649 = vadd.f32 0.0, %v648
      %v650 = vpop.f32.mrf.mxu0
      %v651 = vadd.f32 0.0, %v650
      %652 = vmatmul.bf16.gmra.mxu0 %v603
      %v653 = vpop.f32.mrf.mxu0
      %v654 = vadd.f32 0.0, %v653
      %v655 = vpop.f32.mrf.mxu0
      %v656 = vadd.f32 0.0, %v655
      %657 = vmatmul.bf16.gmra.mxu0 %v606
      %v658 = vpop.f32.mrf.mxu0
      %v659 = vadd.f32 0.0, %v658
      %v660 = vpop.f32.mrf.mxu0
      %v661 = vadd.f32 0.0, %v660
      %662 = vmatmul.bf16.gmra.mxu0 %v609
      %v663 = vpop.f32.mrf.mxu0
      %v664 = vadd.f32 0.0, %v663
      %v665 = vpop.f32.mrf.mxu0
      %v666 = vadd.f32 0.0, %v665
      %667 = vmatmul.bf16.gmra.mxu0 %v612
      %v668 = vpop.f32.mrf.mxu0
      %v669 = vadd.f32 0.0, %v668
      %v670 = vpop.f32.mrf.mxu0
      %v671 = vadd.f32 0.0, %v670
      %672 = vmatmul.bf16.gmra.mxu0 %v615
      %v673 = vpop.f32.mrf.mxu0
      %v674 = vadd.f32 0.0, %v673
      %v675 = vpop.f32.mrf.mxu0
      %v676 = vadd.f32 0.0, %v675
      %677 = vmatmul.bf16.gmra.mxu0 %v618
      %v678 = vpop.f32.mrf.mxu0
      %v679 = vadd.f32 0.0, %v678
      %v680 = vpop.f32.mrf.mxu0
      %v681 = vadd.f32 0.0, %v680
      %682 = vmatmul.bf16.gmra.mxu0 %v621
      %v683 = vpop.f32.mrf.mxu0
      %v684 = vadd.f32 0.0, %v683
      %v685 = vpop.f32.mrf.mxu0
      %v686 = vadd.f32 0.0, %v685
      %687 = vmatmul.bf16.gmra.mxu0 %v624
      %v688 = vpop.f32.mrf.mxu0
      %v689 = vadd.f32 0.0, %v688
      %v690 = vpop.f32.mrf.mxu0
      %v691 = vadd.f32 0.0, %v690
      %692 = vdwg.mxu0
      %v693 = vadd.f32 %v509, %v639
      %v694 = vadd.f32 %v511, %v641
      %v695 = vadd.f32 %v514, %v644
      %v696 = vadd.f32 %v516, %v646
      %v697 = vadd.f32 %v519, %v649
      %v698 = vadd.f32 %v521, %v651
      %v699 = vadd.f32 %v524, %v654
      %v700 = vadd.f32 %v526, %v656
      %v701 = vadd.f32 %v529, %v659
      %v702 = vadd.f32 %v531, %v661
      %v703 = vadd.f32 %v534, %v664
      %v704 = vadd.f32 %v536, %v666
      %v705 = vadd.f32 %v539, %v669
      %v706 = vadd.f32 %v541, %v671
      %v707 = vadd.f32 %v544, %v674
      %v708 = vadd.f32 %v546, %v676
      %v709 = vadd.f32 %v549, %v679
      %v710 = vadd.f32 %v551, %v681
      %v711 = vadd.f32 %v554, %v684
      %v712 = vadd.f32 %v556, %v686
      %v713 = vadd.f32 %v559, %v689
      %v714 = vadd.f32 %v561, %v691
      %v715 = vld [vmem:[%s183 + $0x4] sm:$0xc]
      %v716 = vld [vmem:[%s183 + $0x8] sm:$0xf]
      %v717 = vld [vmem:[%s183 + $0xc] sm:$0xf]
      %v718 = vld [vmem:[%s183 + $0x10] sm:$0xf]
      %v719 = vld [vmem:[%s183 + $0x14] sm:$0xf]
      %v720 = vld [vmem:[%s183 + $0x18] sm:$0xf]
      %v721 = vld [vmem:[%s183 + $0x1c] sm:$0xf]
      %v722 = vld [vmem:[%s183 + $0x20] sm:$0xf]
      %v723 = vld [vmem:[%s183 + $0x24] sm:$0xf]
      %v724 = vld [vmem:[%s183 + $0x28] sm:$0xf]
      %v725 = vld [vmem:[%s183 + $0x2c] sm:$0xf]
      %v726 = vld [vmem:[%s183 + $0x30] sm:$0xf]
      %v727 = vld [vmem:[%s183 + $0x34] sm:$0xf]
      %v728 = vld [vmem:[%s183 + $0x38] sm:$0xf]
      %v729 = vld [vmem:[%s183 + $0x3c] sm:$0xf]
      %v730 = vld [vmem:[%s183 + $0x40] sm:$0xf]
      %v731 = vld [vmem:[%s183 + $0x44] sm:$0xf]
      %v732 = vld [vmem:[%s183 + $0x48] sm:$0xf]
      %v733 = vld [vmem:[%s183 + $0x4c] sm:$0xf]
      %v734 = vld [vmem:[%s183 + $0x50] sm:$0xf]
      %v735 = vld [vmem:[%s183 + $0x54] sm:$0xf]
      %v736 = vld [vmem:[%s183 + $0x58] sm:$0xf]
      %v737 = vld [vmem:[%s183 + $0x5c] sm:$0x7]
      %s738 = scalar_lea.vmem %s1, 12
      %v739 = vld [vmem:[%s738] sm:$0xf]
      %v763 = vunpack.c.l.b16 %v715
      %v764 = vunpack.c.l.b16 %v716
      %v765 = vunpack.c.l.b16 %v717
      %v766 = vunpack.c.l.b16 %v718
      %v767 = vunpack.c.l.b16 %v719
      %v768 = vunpack.c.l.b16 %v720
      %v769 = vunpack.c.l.b16 %v721
      %v770 = vunpack.c.l.b16 %v722
      %v771 = vunpack.c.l.b16 %v723
      %v772 = vunpack.c.l.b16 %v724
      %v773 = vunpack.c.l.b16 %v725
      %v774 = vunpack.c.l.b16 %v726
      %v775 = vunpack.c.l.b16 %v727
      %v776 = vunpack.c.l.b16 %v728
      %v777 = vunpack.c.l.b16 %v729
      %v778 = vunpack.c.l.b16 %v730
      %v779 = vunpack.c.l.b16 %v731
      %v780 = vunpack.c.l.b16 %v732
      %v781 = vunpack.c.l.b16 %v733
      %v782 = vunpack.c.l.b16 %v734
      %v783 = vunpack.c.l.b16 %v735
      %v784 = vunpack.c.l.b16 %v736
      %v785 = vunpack.c.l.b16 %v737
      %v786 = vpack.c.b16 %v764, %v763
      %v787 = vpack.c.b16 %v766, %v765
      %v788 = vpack.c.b16 %v768, %v767
      %v789 = vpack.c.b16 %v770, %v769
      %v790 = vpack.c.b16 %v772, %v771
      %v791 = vpack.c.b16 %v774, %v773
      %v792 = vpack.c.b16 %v776, %v775
      %v793 = vpack.c.b16 %v778, %v777
      %v794 = vpack.c.b16 %v780, %v779
      %v795 = vpack.c.b16 %v782, %v781
      %v796 = vpack.c.b16 %v784, %v783
      %v797 = vpack.c.b16 %v785, %v785
      %vm798 = vsmask.f32 5376
      %v800 = vshrl.u32 %v786, 16
      %v802 = vrot.slane %v800, 2
      %v803 = vshll.u32 %v786, 16
      %v805 = vrot.slane %v803, 3
      %v806 = vor.u32 %v802, %v805
      %v808 = vshrl.u32 %v787, 16
      %v810 = vrot.slane %v808, 2
      %v811 = vshll.u32 %v787, 16
      %v813 = vrot.slane %v811, 3
      %v814 = vor.u32 %v810, %v813
      %v815 = vsel %vm798, %v806, %v814
      %v817 = vshrl.u32 %v788, 16
      %v819 = vrot.slane %v817, 2
      %v820 = vshll.u32 %v788, 16
      %v822 = vrot.slane %v820, 3
      %v823 = vor.u32 %v819, %v822
      %v824 = vsel %vm798, %v814, %v823
      %v826 = vshrl.u32 %v789, 16
      %v828 = vrot.slane %v826, 2
      %v829 = vshll.u32 %v789, 16
      %v831 = vrot.slane %v829, 3
      %v832 = vor.u32 %v828, %v831
      %v833 = vsel %vm798, %v823, %v832
      %v835 = vshrl.u32 %v790, 16
      %v837 = vrot.slane %v835, 2
      %v838 = vshll.u32 %v790, 16
      %v840 = vrot.slane %v838, 3
      %v841 = vor.u32 %v837, %v840
      %v842 = vsel %vm798, %v832, %v841
      %v844 = vshrl.u32 %v791, 16
      %v846 = vrot.slane %v844, 2
      %v847 = vshll.u32 %v791, 16
      %v849 = vrot.slane %v847, 3
      %v850 = vor.u32 %v846, %v849
      %v851 = vsel %vm798, %v841, %v850
      %v853 = vshrl.u32 %v792, 16
      %v855 = vrot.slane %v853, 2
      %v856 = vshll.u32 %v792, 16
      %v858 = vrot.slane %v856, 3
      %v859 = vor.u32 %v855, %v858
      %v860 = vsel %vm798, %v850, %v859
      %v862 = vshrl.u32 %v793, 16
      %v864 = vrot.slane %v862, 2
      %v865 = vshll.u32 %v793, 16
      %v867 = vrot.slane %v865, 3
      %v868 = vor.u32 %v864, %v867
      %v869 = vsel %vm798, %v859, %v868
      %v871 = vshrl.u32 %v794, 16
      %v873 = vrot.slane %v871, 2
      %v874 = vshll.u32 %v794, 16
      %v876 = vrot.slane %v874, 3
      %v877 = vor.u32 %v873, %v876
      %v878 = vsel %vm798, %v868, %v877
      %v880 = vshrl.u32 %v795, 16
      %v882 = vrot.slane %v880, 2
      %v883 = vshll.u32 %v795, 16
      %v885 = vrot.slane %v883, 3
      %v886 = vor.u32 %v882, %v885
      %v887 = vsel %vm798, %v877, %v886
      %v889 = vshrl.u32 %v796, 16
      %v891 = vrot.slane %v889, 2
      %v892 = vshll.u32 %v796, 16
      %v894 = vrot.slane %v892, 3
      %v895 = vor.u32 %v891, %v894
      %v896 = vsel %vm798, %v886, %v895
      %v898 = vshrl.u32 %v797, 16
      %v900 = vrot.slane %v898, 2
      %v901 = vshll.u32 %v797, 16
      %v903 = vrot.slane %v901, 3
      %v904 = vor.u32 %v900, %v903
      %v905 = vsel %vm798, %v895, %v904
      %v907 = vsel %vm372, %v815, 0
      %v910 = vsel %vm372, %v824, 0
      %v913 = vsel %vm372, %v833, 0
      %v916 = vsel %vm372, %v842, 0
      %v919 = vsel %vm372, %v851, 0
      %v922 = vsel %vm372, %v860, 0
      %v925 = vsel %vm372, %v869, 0
      %v928 = vsel %vm372, %v878, 0
      %v931 = vsel %vm372, %v887, 0
      %v934 = vsel %vm372, %v896, 0
      %v937 = vsel %vm372, %v905, 0
      %v940 = vsel %vm406, %v739, 0
      %942 = vmatpush.bf16.msra.mxu0 0
      %943 = vmatpush.bf16.msra.mxu0 0
      %944 = vmatpush.bf16.msra.mxu0 0
      %945 = vmatpush.bf16.msra.mxu0 0
      %946 = vmatpush.bf16.msra.mxu0 0
      %947 = vmatpush.bf16.msra.mxu0 0
      %948 = vmatpush.bf16.msra.mxu0 0
      %949 = vmatpush.bf16.msra.mxu0 %v940
      %950 = vmatmul.bf16.gmra.mxu0 %v907
      %v951 = vpop.f32.mrf.mxu0
      %v952 = vadd.f32 0.0, %v951
      %v953 = vpop.f32.mrf.mxu0
      %v954 = vadd.f32 0.0, %v953
      %955 = vmatmul.bf16.gmra.mxu0 %v910
      %v956 = vpop.f32.mrf.mxu0
      %v957 = vadd.f32 0.0, %v956
      %v958 = vpop.f32.mrf.mxu0
      %v959 = vadd.f32 0.0, %v958
      %960 = vmatmul.bf16.gmra.mxu0 %v913
      %v961 = vpop.f32.mrf.mxu0
      %v962 = vadd.f32 0.0, %v961
      %v963 = vpop.f32.mrf.mxu0
      %v964 = vadd.f32 0.0, %v963
      %965 = vmatmul.bf16.gmra.mxu0 %v916
      %v966 = vpop.f32.mrf.mxu0
      %v967 = vadd.f32 0.0, %v966
      %v968 = vpop.f32.mrf.mxu0
      %v969 = vadd.f32 0.0, %v968
      %970 = vmatmul.bf16.gmra.mxu0 %v919
      %v971 = vpop.f32.mrf.mxu0
      %v972 = vadd.f32 0.0, %v971
      %v973 = vpop.f32.mrf.mxu0
      %v974 = vadd.f32 0.0, %v973
      %975 = vmatmul.bf16.gmra.mxu0 %v922
      %v976 = vpop.f32.mrf.mxu0
      %v977 = vadd.f32 0.0, %v976
      %v978 = vpop.f32.mrf.mxu0
      %v979 = vadd.f32 0.0, %v978
      %980 = vmatmul.bf16.gmra.mxu0 %v925
      %v981 = vpop.f32.mrf.mxu0
      %v982 = vadd.f32 0.0, %v981
      %v983 = vpop.f32.mrf.mxu0
      %v984 = vadd.f32 0.0, %v983
      %985 = vmatmul.bf16.gmra.mxu0 %v928
      %v986 = vpop.f32.mrf.mxu0
      %v987 = vadd.f32 0.0, %v986
      %v988 = vpop.f32.mrf.mxu0
      %v989 = vadd.f32 0.0, %v988
      %990 = vmatmul.bf16.gmra.mxu0 %v931
      %v991 = vpop.f32.mrf.mxu0
      %v992 = vadd.f32 0.0, %v991
      %v993 = vpop.f32.mrf.mxu0
      %v994 = vadd.f32 0.0, %v993
      %995 = vmatmul.bf16.gmra.mxu0 %v934
      %v996 = vpop.f32.mrf.mxu0
      %v997 = vadd.f32 0.0, %v996
      %v998 = vpop.f32.mrf.mxu0
      %v999 = vadd.f32 0.0, %v998
      %1000 = vmatmul.bf16.gmra.mxu0 %v937
      %v1001 = vpop.f32.mrf.mxu0
      %v1002 = vadd.f32 0.0, %v1001
      %v1003 = vpop.f32.mrf.mxu0
      %v1004 = vadd.f32 0.0, %v1003
      %1005 = vdwg.mxu0
      %v1006 = vadd.f32 %v693, %v952
      %v1007 = vadd.f32 %v694, %v954
      %v1008 = vadd.f32 %v695, %v957
      %v1009 = vadd.f32 %v696, %v959
      %v1010 = vadd.f32 %v697, %v962
      %v1011 = vadd.f32 %v698, %v964
      %v1012 = vadd.f32 %v699, %v967
      %v1013 = vadd.f32 %v700, %v969
      %v1014 = vadd.f32 %v701, %v972
      %v1015 = vadd.f32 %v702, %v974
      %v1016 = vadd.f32 %v703, %v977
      %v1017 = vadd.f32 %v704, %v979
      %v1018 = vadd.f32 %v705, %v982
      %v1019 = vadd.f32 %v706, %v984
      %v1020 = vadd.f32 %v707, %v987
      %v1021 = vadd.f32 %v708, %v989
      %v1022 = vadd.f32 %v709, %v992
      %v1023 = vadd.f32 %v710, %v994
      %v1024 = vadd.f32 %v711, %v997
      %v1025 = vadd.f32 %v712, %v999
      %v1026 = vadd.f32 %v713, %v1002
      %v1027 = vadd.f32 %v714, %v1004
      %v1028 = vld [vmem:[%s183 + $0x4] sm:$0x8]
      %s1029 = scalar_lea.vmem %s1, 16
      %v1030 = vld [vmem:[%s1029] sm:$0xf]
      %v1032 = vunpack.c.l.b16 %v1028
      %v1033 = vpack.c.b16 %v764, %v1032
      %vm1034 = vcmask 1044480
      %v1035 = vrot.slane %v1033, 3
      %v1036 = vrot.slane %v787, 3
      %v1037 = vsel %vm1034, %v1035, %v1036
      %v1038 = vrot.slane %v788, 3
      %v1039 = vsel %vm1034, %v1036, %v1038
      %v1040 = vrot.slane %v789, 3
      %v1041 = vsel %vm1034, %v1038, %v1040
      %v1042 = vrot.slane %v790, 3
      %v1043 = vsel %vm1034, %v1040, %v1042
      %v1044 = vrot.slane %v791, 3
      %v1045 = vsel %vm1034, %v1042, %v1044
      %v1046 = vrot.slane %v792, 3
      %v1047 = vsel %vm1034, %v1044, %v1046
      %v1048 = vrot.slane %v793, 3
      %v1049 = vsel %vm1034, %v1046, %v1048
      %v1050 = vrot.slane %v794, 3
      %v1051 = vsel %vm1034, %v1048, %v1050
      %v1052 = vrot.slane %v795, 3
      %v1053 = vsel %vm1034, %v1050, %v1052
      %v1054 = vrot.slane %v796, 3
      %v1055 = vsel %vm1034, %v1052, %v1054
      %v1056 = vrot.slane %v797, 3
      %v1057 = vsel %vm1034, %v1054, %v1056
      %v1059 = vsel %vm372, %v1037, 0
      %v1062 = vsel %vm372, %v1039, 0
      %v1065 = vsel %vm372, %v1041, 0
      %v1068 = vsel %vm372, %v1043, 0
      %v1071 = vsel %vm372, %v1045, 0
      %v1074 = vsel %vm372, %v1047, 0
      %v1077 = vsel %vm372, %v1049, 0
      %v1080 = vsel %vm372, %v1051, 0
      %v1083 = vsel %vm372, %v1053, 0
      %v1086 = vsel %vm372, %v1055, 0
      %v1089 = vsel %vm372, %v1057, 0
      %v1092 = vsel %vm406, %v1030, 0
      %1094 = vmatpush.bf16.msra.mxu0 0
      %1095 = vmatpush.bf16.msra.mxu0 0
      %1096 = vmatpush.bf16.msra.mxu0 0
      %1097 = vmatpush.bf16.msra.mxu0 0
      %1098 = vmatpush.bf16.msra.mxu0 0
      %1099 = vmatpush.bf16.msra.mxu0 0
      %1100 = vmatpush.bf16.msra.mxu0 0
      %1101 = vmatpush.bf16.msra.mxu0 %v1092
      %1102 = vmatmul.bf16.gmra.mxu0 %v1059
      %v1103 = vpop.f32.mrf.mxu0
      %v1104 = vadd.f32 0.0, %v1103
      %v1105 = vpop.f32.mrf.mxu0
      %v1106 = vadd.f32 0.0, %v1105
      %1107 = vmatmul.bf16.gmra.mxu0 %v1062
      %v1108 = vpop.f32.mrf.mxu0
      %v1109 = vadd.f32 0.0, %v1108
      %v1110 = vpop.f32.mrf.mxu0
      %v1111 = vadd.f32 0.0, %v1110
      %1112 = vmatmul.bf16.gmra.mxu0 %v1065
      %v1113 = vpop.f32.mrf.mxu0
      %v1114 = vadd.f32 0.0, %v1113
      %v1115 = vpop.f32.mrf.mxu0
      %v1116 = vadd.f32 0.0, %v1115
      %1117 = vmatmul.bf16.gmra.mxu0 %v1068
      %v1118 = vpop.f32.mrf.mxu0
      %v1119 = vadd.f32 0.0, %v1118
      %v1120 = vpop.f32.mrf.mxu0
      %v1121 = vadd.f32 0.0, %v1120
      %1122 = vmatmul.bf16.gmra.mxu0 %v1071
      %v1123 = vpop.f32.mrf.mxu0
      %v1124 = vadd.f32 0.0, %v1123
      %v1125 = vpop.f32.mrf.mxu0
      %v1126 = vadd.f32 0.0, %v1125
      %1127 = vmatmul.bf16.gmra.mxu0 %v1074
      %v1128 = vpop.f32.mrf.mxu0
      %v1129 = vadd.f32 0.0, %v1128
      %v1130 = vpop.f32.mrf.mxu0
      %v1131 = vadd.f32 0.0, %v1130
      %1132 = vmatmul.bf16.gmra.mxu0 %v1077
      %v1133 = vpop.f32.mrf.mxu0
      %v1134 = vadd.f32 0.0, %v1133
      %v1135 = vpop.f32.mrf.mxu0
      %v1136 = vadd.f32 0.0, %v1135
      %1137 = vmatmul.bf16.gmra.mxu0 %v1080
      %v1138 = vpop.f32.mrf.mxu0
      %v1139 = vadd.f32 0.0, %v1138
      %v1140 = vpop.f32.mrf.mxu0
      %v1141 = vadd.f32 0.0, %v1140
      %1142 = vmatmul.bf16.gmra.mxu0 %v1083
      %v1143 = vpop.f32.mrf.mxu0
      %v1144 = vadd.f32 0.0, %v1143
      %v1145 = vpop.f32.mrf.mxu0
      %v1146 = vadd.f32 0.0, %v1145
      %1147 = vmatmul.bf16.gmra.mxu0 %v1086
      %v1148 = vpop.f32.mrf.mxu0
      %v1149 = vadd.f32 0.0, %v1148
      %v1150 = vpop.f32.mrf.mxu0
      %v1151 = vadd.f32 0.0, %v1150
      %1152 = vmatmul.bf16.gmra.mxu0 %v1089
      %v1153 = vpop.f32.mrf.mxu0
      %v1154 = vadd.f32 0.0, %v1153
      %v1155 = vpop.f32.mrf.mxu0
      %v1156 = vadd.f32 0.0, %v1155
      %1157 = vdwg.mxu0
      %v1158 = vadd.f32 %v1006, %v1104
      %v1159 = vadd.f32 %v1007, %v1106
      %v1160 = vadd.f32 %v1008, %v1109
      %v1161 = vadd.f32 %v1009, %v1111
      %v1162 = vadd.f32 %v1010, %v1114
      %v1163 = vadd.f32 %v1011, %v1116
      %v1164 = vadd.f32 %v1012, %v1119
      %v1165 = vadd.f32 %v1013, %v1121
      %v1166 = vadd.f32 %v1014, %v1124
      %v1167 = vadd.f32 %v1015, %v1126
      %v1168 = vadd.f32 %v1016, %v1129
      %v1169 = vadd.f32 %v1017, %v1131
      %v1170 = vadd.f32 %v1018, %v1134
      %v1171 = vadd.f32 %v1019, %v1136
      %v1172 = vadd.f32 %v1020, %v1139
      %v1173 = vadd.f32 %v1021, %v1141
      %v1174 = vadd.f32 %v1022, %v1144
      %v1175 = vadd.f32 %v1023, %v1146
      %v1176 = vadd.f32 %v1024, %v1149
      %v1177 = vadd.f32 %v1025, %v1151
      %v1178 = vadd.f32 %v1026, %v1154
      %v1179 = vadd.f32 %v1027, %v1156
      %v1180 = vld [vmem:[%s183 + $0x5c] sm:$0xf]
      %s1181 = scalar_lea.vmem %s1, 20
      %v1182 = vld [vmem:[%s1181] sm:$0xf]
      %v1184 = vunpack.c.l.b16 %v1180
      %v1185 = vpack.c.b16 %v1184, %v1184
      %vm1186 = vsmask.f32 4352
      %v1188 = vshrl.u32 %v1033, 16
      %v1190 = vrot.slane %v1188, 3
      %v1191 = vshll.u32 %v1033, 16
      %v1193 = vrot.slane %v1191, 4
      %v1194 = vor.u32 %v1190, %v1193
      %v1195 = vrot.slane %v808, 3
      %v1196 = vrot.slane %v811, 4
      %v1197 = vor.u32 %v1195, %v1196
      %v1198 = vsel %vm1186, %v1194, %v1197
      %v1199 = vrot.slane %v817, 3
      %v1200 = vrot.slane %v820, 4
      %v1201 = vor.u32 %v1199, %v1200
      %v1202 = vsel %vm1186, %v1197, %v1201
      %v1203 = vrot.slane %v826, 3
      %v1204 = vrot.slane %v829, 4
      %v1205 = vor.u32 %v1203, %v1204
      %v1206 = vsel %vm1186, %v1201, %v1205
      %v1207 = vrot.slane %v835, 3
      %v1208 = vrot.slane %v838, 4
      %v1209 = vor.u32 %v1207, %v1208
      %v1210 = vsel %vm1186, %v1205, %v1209
      %v1211 = vrot.slane %v844, 3
      %v1212 = vrot.slane %v847, 4
      %v1213 = vor.u32 %v1211, %v1212
      %v1214 = vsel %vm1186, %v1209, %v1213
      %v1215 = vrot.slane %v853, 3
      %v1216 = vrot.slane %v856, 4
      %v1217 = vor.u32 %v1215, %v1216
      %v1218 = vsel %vm1186, %v1213, %v1217
      %v1219 = vrot.slane %v862, 3
      %v1220 = vrot.slane %v865, 4
      %v1221 = vor.u32 %v1219, %v1220
      %v1222 = vsel %vm1186, %v1217, %v1221
      %v1223 = vrot.slane %v871, 3
      %v1224 = vrot.slane %v874, 4
      %v1225 = vor.u32 %v1223, %v1224
      %v1226 = vsel %vm1186, %v1221, %v1225
      %v1227 = vrot.slane %v880, 3
      %v1228 = vrot.slane %v883, 4
      %v1229 = vor.u32 %v1227, %v1228
      %v1230 = vsel %vm1186, %v1225, %v1229
      %v1231 = vrot.slane %v889, 3
      %v1232 = vrot.slane %v892, 4
      %v1233 = vor.u32 %v1231, %v1232
      %v1234 = vsel %vm1186, %v1229, %v1233
      %v1236 = vshrl.u32 %v1185, 16
      %v1238 = vrot.slane %v1236, 3
      %v1239 = vshll.u32 %v1185, 16
      %v1241 = vrot.slane %v1239, 4
      %v1242 = vor.u32 %v1238, %v1241
      %v1243 = vsel %vm1186, %v1233, %v1242
      %v1245 = vsel %vm372, %v1198, 0
      %v1248 = vsel %vm372, %v1202, 0
      %v1251 = vsel %vm372, %v1206, 0
      %v1254 = vsel %vm372, %v1210, 0
      %v1257 = vsel %vm372, %v1214, 0
      %v1260 = vsel %vm372, %v1218, 0
      %v1263 = vsel %vm372, %v1222, 0
      %v1266 = vsel %vm372, %v1226, 0
      %v1269 = vsel %vm372, %v1230, 0
      %v1272 = vsel %vm372, %v1234, 0
      %v1275 = vsel %vm372, %v1243, 0
      %v1278 = vsel %vm406, %v1182, 0
      %1280 = vmatpush.bf16.msra.mxu0 0
      %1281 = vmatpush.bf16.msra.mxu0 0
      %1282 = vmatpush.bf16.msra.mxu0 0
      %1283 = vmatpush.bf16.msra.mxu0 0
      %1284 = vmatpush.bf16.msra.mxu0 0
      %1285 = vmatpush.bf16.msra.mxu0 0
      %1286 = vmatpush.bf16.msra.mxu0 0
      %1287 = vmatpush.bf16.msra.mxu0 %v1278
      %1288 = vmatmul.bf16.gmra.mxu0 %v1245
      %v1289 = vpop.f32.mrf.mxu0
      %v1290 = vadd.f32 0.0, %v1289
      %v1291 = vpop.f32.mrf.mxu0
      %v1292 = vadd.f32 0.0, %v1291
      %1293 = vmatmul.bf16.gmra.mxu0 %v1248
      %v1294 = vpop.f32.mrf.mxu0
      %v1295 = vadd.f32 0.0, %v1294
      %v1296 = vpop.f32.mrf.mxu0
      %v1297 = vadd.f32 0.0, %v1296
      %1298 = vmatmul.bf16.gmra.mxu0 %v1251
      %v1299 = vpop.f32.mrf.mxu0
      %v1300 = vadd.f32 0.0, %v1299
      %v1301 = vpop.f32.mrf.mxu0
      %v1302 = vadd.f32 0.0, %v1301
      %1303 = vmatmul.bf16.gmra.mxu0 %v1254
      %v1304 = vpop.f32.mrf.mxu0
      %v1305 = vadd.f32 0.0, %v1304
      %v1306 = vpop.f32.mrf.mxu0
      %v1307 = vadd.f32 0.0, %v1306
      %1308 = vmatmul.bf16.gmra.mxu0 %v1257
      %v1309 = vpop.f32.mrf.mxu0
      %v1310 = vadd.f32 0.0, %v1309
      %v1311 = vpop.f32.mrf.mxu0
      %v1312 = vadd.f32 0.0, %v1311
      %1313 = vmatmul.bf16.gmra.mxu0 %v1260
      %v1314 = vpop.f32.mrf.mxu0
      %v1315 = vadd.f32 0.0, %v1314
      %v1316 = vpop.f32.mrf.mxu0
      %v1317 = vadd.f32 0.0, %v1316
      %1318 = vmatmul.bf16.gmra.mxu0 %v1263
      %v1319 = vpop.f32.mrf.mxu0
      %v1320 = vadd.f32 0.0, %v1319
      %v1321 = vpop.f32.mrf.mxu0
      %v1322 = vadd.f32 0.0, %v1321
      %1323 = vmatmul.bf16.gmra.mxu0 %v1266
      %v1324 = vpop.f32.mrf.mxu0
      %v1325 = vadd.f32 0.0, %v1324
      %v1326 = vpop.f32.mrf.mxu0
      %v1327 = vadd.f32 0.0, %v1326
      %1328 = vmatmul.bf16.gmra.mxu0 %v1269
      %v1329 = vpop.f32.mrf.mxu0
      %v1330 = vadd.f32 0.0, %v1329
      %v1331 = vpop.f32.mrf.mxu0
      %v1332 = vadd.f32 0.0, %v1331
      %1333 = vmatmul.bf16.gmra.mxu0 %v1272
      %v1334 = vpop.f32.mrf.mxu0
      %v1335 = vadd.f32 0.0, %v1334
      %v1336 = vpop.f32.mrf.mxu0
      %v1337 = vadd.f32 0.0, %v1336
      %1338 = vmatmul.bf16.gmra.mxu0 %v1275
      %v1339 = vpop.f32.mrf.mxu0
      %v1340 = vadd.f32 0.0, %v1339
      %v1341 = vpop.f32.mrf.mxu0
      %v1342 = vadd.f32 0.0, %v1341
      %1343 = vdwg.mxu0
      %v1344 = vadd.f32 %v1158, %v1290
      %v1345 = vadd.f32 %v1159, %v1292
      %v1346 = vadd.f32 %v1160, %v1295
      %v1347 = vadd.f32 %v1161, %v1297
      %v1348 = vadd.f32 %v1162, %v1300
      %v1349 = vadd.f32 %v1163, %v1302
      %v1350 = vadd.f32 %v1164, %v1305
      %v1351 = vadd.f32 %v1165, %v1307
      %v1352 = vadd.f32 %v1166, %v1310
      %v1353 = vadd.f32 %v1167, %v1312
      %v1354 = vadd.f32 %v1168, %v1315
      %v1355 = vadd.f32 %v1169, %v1317
      %v1356 = vadd.f32 %v1170, %v1320
      %v1357 = vadd.f32 %v1171, %v1322
      %v1358 = vadd.f32 %v1172, %v1325
      %v1359 = vadd.f32 %v1173, %v1327
      %v1360 = vadd.f32 %v1174, %v1330
      %v1361 = vadd.f32 %v1175, %v1332
      %v1362 = vadd.f32 %v1176, %v1335
      %v1363 = vadd.f32 %v1177, %v1337
      %v1364 = vadd.f32 %v1178, %v1340
      %v1365 = vadd.f32 %v1179, %v1342
      %v1366 = vld [vmem:[%s183 + $0xc] sm:$0xe]
      %v1367 = vld [vmem:[%s183 + $0x10] sm:$0xf]
      %v1368 = vld [vmem:[%s183 + $0x14] sm:$0xf]
      %v1369 = vld [vmem:[%s183 + $0x18] sm:$0xf]
      %v1370 = vld [vmem:[%s183 + $0x1c] sm:$0xf]
      %v1371 = vld [vmem:[%s183 + $0x20] sm:$0xf]
      %v1372 = vld [vmem:[%s183 + $0x24] sm:$0xf]
      %v1373 = vld [vmem:[%s183 + $0x28] sm:$0xf]
      %v1374 = vld [vmem:[%s183 + $0x2c] sm:$0xf]
      %v1375 = vld [vmem:[%s183 + $0x30] sm:$0xf]
      %v1376 = vld [vmem:[%s183 + $0x34] sm:$0xf]
      %v1377 = vld [vmem:[%s183 + $0x38] sm:$0xf]
      %v1378 = vld [vmem:[%s183 + $0x3c] sm:$0xf]
      %v1379 = vld [vmem:[%s183 + $0x40] sm:$0xf]
      %v1380 = vld [vmem:[%s183 + $0x44] sm:$0xf]
      %v1381 = vld [vmem:[%s183 + $0x48] sm:$0xf]
      %v1382 = vld [vmem:[%s183 + $0x4c] sm:$0xf]
      %v1383 = vld [vmem:[%s183 + $0x50] sm:$0xf]
      %v1384 = vld [vmem:[%s183 + $0x54] sm:$0xf]
      %v1385 = vld [vmem:[%s183 + $0x58] sm:$0xf]
      %v1386 = vld [vmem:[%s183 + $0x5c] sm:$0xf]
      %v1387 = vld [vmem:[%s183 + $0x60] sm:$0xf]
      %v1388 = vld [vmem:[%s183 + $0x64] sm:$0x1]
      %s1389 = scalar_lea.vmem %s1, 24
      %v1390 = vld [vmem:[%s1389] sm:$0xf]
      %v1414 = vunpack.c.l.b16 %v1366
      %v1415 = vunpack.c.l.b16 %v1367
      %v1416 = vunpack.c.l.b16 %v1368
      %v1417 = vunpack.c.l.b16 %v1369
      %v1418 = vunpack.c.l.b16 %v1370
      %v1419 = vunpack.c.l.b16 %v1371
      %v1420 = vunpack.c.l.b16 %v1372
      %v1421 = vunpack.c.l.b16 %v1373
      %v1422 = vunpack.c.l.b16 %v1374
      %v1423 = vunpack.c.l.b16 %v1375
      %v1424 = vunpack.c.l.b16 %v1376
      %v1425 = vunpack.c.l.b16 %v1377
      %v1426 = vunpack.c.l.b16 %v1378
      %v1427 = vunpack.c.l.b16 %v1379
      %v1428 = vunpack.c.l.b16 %v1380
      %v1429 = vunpack.c.l.b16 %v1381
      %v1430 = vunpack.c.l.b16 %v1382
      %v1431 = vunpack.c.l.b16 %v1383
      %v1432 = vunpack.c.l.b16 %v1384
      %v1433 = vunpack.c.l.b16 %v1385
      %v1434 = vunpack.c.l.b16 %v1386
      %v1435 = vunpack.c.l.b16 %v1387
      %v1436 = vunpack.c.l.b16 %v1388
      %v1437 = vpack.c.b16 %v1415, %v1414
      %v1438 = vpack.c.b16 %v1417, %v1416
      %v1439 = vpack.c.b16 %v1419, %v1418
      %v1440 = vpack.c.b16 %v1421, %v1420
      %v1441 = vpack.c.b16 %v1423, %v1422
      %v1442 = vpack.c.b16 %v1425, %v1424
      %v1443 = vpack.c.b16 %v1427, %v1426
      %v1444 = vpack.c.b16 %v1429, %v1428
      %v1445 = vpack.c.b16 %v1431, %v1430
      %v1446 = vpack.c.b16 %v1433, %v1432
      %v1447 = vpack.c.b16 %v1435, %v1434
      %v1448 = vpack.c.b16 %v1436, %v1436
      %v1449 = vrot.slane %v1437, 1
      %v1450 = vrot.slane %v1438, 1
      %v1451 = vsel %vm569, %v1449, %v1450
      %v1452 = vrot.slane %v1439, 1
      %v1453 = vsel %vm569, %v1450, %v1452
      %v1454 = vrot.slane %v1440, 1
      %v1455 = vsel %vm569, %v1452, %v1454
      %v1456 = vrot.slane %v1441, 1
      %v1457 = vsel %vm569, %v1454, %v1456
      %v1458 = vrot.slane %v1442, 1
      %v1459 = vsel %vm569, %v1456, %v1458
      %v1460 = vrot.slane %v1443, 1
      %v1461 = vsel %vm569, %v1458, %v1460
      %v1462 = vrot.slane %v1444, 1
      %v1463 = vsel %vm569, %v1460, %v1462
      %v1464 = vrot.slane %v1445, 1
      %v1465 = vsel %vm569, %v1462, %v1464
      %v1466 = vrot.slane %v1446, 1
      %v1467 = vsel %vm569, %v1464, %v1466
      %v1468 = vrot.slane %v1447, 1
      %v1469 = vsel %vm569, %v1466, %v1468
      %v1470 = vrot.slane %v1448, 1
      %v1471 = vsel %vm569, %v1468, %v1470
      %v1473 = vsel %vm372, %v1451, 0
      %v1476 = vsel %vm372, %v1453, 0
      %v1479 = vsel %vm372, %v1455, 0
      %v1482 = vsel %vm372, %v1457, 0
      %v1485 = vsel %vm372, %v1459, 0
      %v1488 = vsel %vm372, %v1461, 0
      %v1491 = vsel %vm372, %v1463, 0
      %v1494 = vsel %vm372, %v1465, 0
      %v1497 = vsel %vm372, %v1467, 0
      %v1500 = vsel %vm372, %v1469, 0
      %v1503 = vsel %vm372, %v1471, 0
      %v1506 = vsel %vm406, %v1390, 0
      %1508 = vmatpush.bf16.msra.mxu0 0
      %1509 = vmatpush.bf16.msra.mxu0 0
      %1510 = vmatpush.bf16.msra.mxu0 0
      %1511 = vmatpush.bf16.msra.mxu0 0
      %1512 = vmatpush.bf16.msra.mxu0 0
      %1513 = vmatpush.bf16.msra.mxu0 0
      %1514 = vmatpush.bf16.msra.mxu0 0
      %1515 = vmatpush.bf16.msra.mxu0 %v1506
      %1516 = vmatmul.bf16.gmra.mxu0 %v1473
      %v1517 = vpop.f32.mrf.mxu0
      %v1518 = vadd.f32 0.0, %v1517
      %v1519 = vpop.f32.mrf.mxu0
      %v1520 = vadd.f32 0.0, %v1519
      %1521 = vmatmul.bf16.gmra.mxu0 %v1476
      %v1522 = vpop.f32.mrf.mxu0
      %v1523 = vadd.f32 0.0, %v1522
      %v1524 = vpop.f32.mrf.mxu0
      %v1525 = vadd.f32 0.0, %v1524
      %1526 = vmatmul.bf16.gmra.mxu0 %v1479
      %v1527 = vpop.f32.mrf.mxu0
      %v1528 = vadd.f32 0.0, %v1527
      %v1529 = vpop.f32.mrf.mxu0
      %v1530 = vadd.f32 0.0, %v1529
      %1531 = vmatmul.bf16.gmra.mxu0 %v1482
      %v1532 = vpop.f32.mrf.mxu0
      %v1533 = vadd.f32 0.0, %v1532
      %v1534 = vpop.f32.mrf.mxu0
      %v1535 = vadd.f32 0.0, %v1534
      %1536 = vmatmul.bf16.gmra.mxu0 %v1485
      %v1537 = vpop.f32.mrf.mxu0
      %v1538 = vadd.f32 0.0, %v1537
      %v1539 = vpop.f32.mrf.mxu0
      %v1540 = vadd.f32 0.0, %v1539
      %1541 = vmatmul.bf16.gmra.mxu0 %v1488
      %v1542 = vpop.f32.mrf.mxu0
      %v1543 = vadd.f32 0.0, %v1542
      %v1544 = vpop.f32.mrf.mxu0
      %v1545 = vadd.f32 0.0, %v1544
      %1546 = vmatmul.bf16.gmra.mxu0 %v1491
      %v1547 = vpop.f32.mrf.mxu0
      %v1548 = vadd.f32 0.0, %v1547
      %v1549 = vpop.f32.mrf.mxu0
      %v1550 = vadd.f32 0.0, %v1549
      %1551 = vmatmul.bf16.gmra.mxu0 %v1494
      %v1552 = vpop.f32.mrf.mxu0
      %v1553 = vadd.f32 0.0, %v1552
      %v1554 = vpop.f32.mrf.mxu0
      %v1555 = vadd.f32 0.0, %v1554
      %1556 = vmatmul.bf16.gmra.mxu0 %v1497
      %v1557 = vpop.f32.mrf.mxu0
      %v1558 = vadd.f32 0.0, %v1557
      %v1559 = vpop.f32.mrf.mxu0
      %v1560 = vadd.f32 0.0, %v1559
      %1561 = vmatmul.bf16.gmra.mxu0 %v1500
      %v1562 = vpop.f32.mrf.mxu0
      %v1563 = vadd.f32 0.0, %v1562
      %v1564 = vpop.f32.mrf.mxu0
      %v1565 = vadd.f32 0.0, %v1564
      %1566 = vmatmul.bf16.gmra.mxu0 %v1503
      %v1567 = vpop.f32.mrf.mxu0
      %v1568 = vadd.f32 0.0, %v1567
      %v1569 = vpop.f32.mrf.mxu0
      %v1570 = vadd.f32 0.0, %v1569
      %1571 = vdwg.mxu0
      %v1572 = vadd.f32 %v1344, %v1518
      %v1573 = vadd.f32 %v1345, %v1520
      %v1574 = vadd.f32 %v1346, %v1523
      %v1575 = vadd.f32 %v1347, %v1525
      %v1576 = vadd.f32 %v1348, %v1528
      %v1577 = vadd.f32 %v1349, %v1530
      %v1578 = vadd.f32 %v1350, %v1533
      %v1579 = vadd.f32 %v1351, %v1535
      %v1580 = vadd.f32 %v1352, %v1538
      %v1581 = vadd.f32 %v1353, %v1540
      %v1582 = vadd.f32 %v1354, %v1543
      %v1583 = vadd.f32 %v1355, %v1545
      %v1584 = vadd.f32 %v1356, %v1548
      %v1585 = vadd.f32 %v1357, %v1550
      %v1586 = vadd.f32 %v1358, %v1553
      %v1587 = vadd.f32 %v1359, %v1555
      %v1588 = vadd.f32 %v1360, %v1558
      %v1589 = vadd.f32 %v1361, %v1560
      %v1590 = vadd.f32 %v1362, %v1563
      %v1591 = vadd.f32 %v1363, %v1565
      %v1592 = vadd.f32 %v1364, %v1568
      %v1593 = vadd.f32 %v1365, %v1570
      %v1594 = vld [vmem:[%s183 + $0x64] sm:$0x3]
      %s1595 = scalar_lea.vmem %s1, 28
      %v1596 = vld [vmem:[%s1595] sm:$0xf]
      %v1598 = vunpack.c.l.b16 %v1594
      %v1599 = vpack.c.b16 %v1598, %v1598
      %vm1600 = vsmask.f32 6400
      %v1602 = vshrl.u32 %v1437, 16
      %v1604 = vrot.slane %v1602, 1
      %v1605 = vshll.u32 %v1437, 16
      %v1607 = vrot.slane %v1605, 2
      %v1608 = vor.u32 %v1604, %v1607
      %v1610 = vshrl.u32 %v1438, 16
      %v1612 = vrot.slane %v1610, 1
      %v1613 = vshll.u32 %v1438, 16
      %v1615 = vrot.slane %v1613, 2
      %v1616 = vor.u32 %v1612, %v1615
      %v1617 = vsel %vm1600, %v1608, %v1616
      %v1619 = vshrl.u32 %v1439, 16
      %v1621 = vrot.slane %v1619, 1
      %v1622 = vshll.u32 %v1439, 16
      %v1624 = vrot.slane %v1622, 2
      %v1625 = vor.u32 %v1621, %v1624
      %v1626 = vsel %vm1600, %v1616, %v1625
      %v1628 = vshrl.u32 %v1440, 16
      %v1630 = vrot.slane %v1628, 1
      %v1631 = vshll.u32 %v1440, 16
      %v1633 = vrot.slane %v1631, 2
      %v1634 = vor.u32 %v1630, %v1633
      %v1635 = vsel %vm1600, %v1625, %v1634
      %v1637 = vshrl.u32 %v1441, 16
      %v1639 = vrot.slane %v1637, 1
      %v1640 = vshll.u32 %v1441, 16
      %v1642 = vrot.slane %v1640, 2
      %v1643 = vor.u32 %v1639, %v1642
      %v1644 = vsel %vm1600, %v1634, %v1643
      %v1646 = vshrl.u32 %v1442, 16
      %v1648 = vrot.slane %v1646, 1
      %v1649 = vshll.u32 %v1442, 16
      %v1651 = vrot.slane %v1649, 2
      %v1652 = vor.u32 %v1648, %v1651
      %v1653 = vsel %vm1600, %v1643, %v1652
      %v1655 = vshrl.u32 %v1443, 16
      %v1657 = vrot.slane %v1655, 1
      %v1658 = vshll.u32 %v1443, 16
      %v1660 = vrot.slane %v1658, 2
      %v1661 = vor.u32 %v1657, %v1660
      %v1662 = vsel %vm1600, %v1652, %v1661
      %v1664 = vshrl.u32 %v1444, 16
      %v1666 = vrot.slane %v1664, 1
      %v1667 = vshll.u32 %v1444, 16
      %v1669 = vrot.slane %v1667, 2
      %v1670 = vor.u32 %v1666, %v1669
      %v1671 = vsel %vm1600, %v1661, %v1670
      %v1673 = vshrl.u32 %v1445, 16
      %v1675 = vrot.slane %v1673, 1
      %v1676 = vshll.u32 %v1445, 16
      %v1678 = vrot.slane %v1676, 2
      %v1679 = vor.u32 %v1675, %v1678
      %v1680 = vsel %vm1600, %v1670, %v1679
      %v1682 = vshrl.u32 %v1446, 16
      %v1684 = vrot.slane %v1682, 1
      %v1685 = vshll.u32 %v1446, 16
      %v1687 = vrot.slane %v1685, 2
      %v1688 = vor.u32 %v1684, %v1687
      %v1689 = vsel %vm1600, %v1679, %v1688
      %v1691 = vshrl.u32 %v1447, 16
      %v1693 = vrot.slane %v1691, 1
      %v1694 = vshll.u32 %v1447, 16
      %v1696 = vrot.slane %v1694, 2
      %v1697 = vor.u32 %v1693, %v1696
      %v1698 = vsel %vm1600, %v1688, %v1697
      %v1700 = vshrl.u32 %v1599, 16
      %v1702 = vrot.slane %v1700, 1
      %v1703 = vshll.u32 %v1599, 16
      %v1705 = vrot.slane %v1703, 2
      %v1706 = vor.u32 %v1702, %v1705
      %v1707 = vsel %vm1600, %v1697, %v1706
      %v1709 = vsel %vm372, %v1617, 0
      %v1712 = vsel %vm372, %v1626, 0
      %v1715 = vsel %vm372, %v1635, 0
      %v1718 = vsel %vm372, %v1644, 0
      %v1721 = vsel %vm372, %v1653, 0
      %v1724 = vsel %vm372, %v1662, 0
      %v1727 = vsel %vm372, %v1671, 0
      %v1730 = vsel %vm372, %v1680, 0
      %v1733 = vsel %vm372, %v1689, 0
      %v1736 = vsel %vm372, %v1698, 0
      %v1739 = vsel %vm372, %v1707, 0
      %v1742 = vsel %vm406, %v1596, 0
      %1744 = vmatpush.bf16.msra.mxu0 0
      %1745 = vmatpush.bf16.msra.mxu0 0
      %1746 = vmatpush.bf16.msra.mxu0 0
      %1747 = vmatpush.bf16.msra.mxu0 0
      %1748 = vmatpush.bf16.msra.mxu0 0
      %1749 = vmatpush.bf16.msra.mxu0 0
      %1750 = vmatpush.bf16.msra.mxu0 0
      %1751 = vmatpush.bf16.msra.mxu0 %v1742
      %1752 = vmatmul.bf16.gmra.mxu0 %v1709
      %v1753 = vpop.f32.mrf.mxu0
      %v1754 = vadd.f32 0.0, %v1753
      %v1755 = vpop.f32.mrf.mxu0
      %v1756 = vadd.f32 0.0, %v1755
      %1757 = vmatmul.bf16.gmra.mxu0 %v1712
      %v1758 = vpop.f32.mrf.mxu0
      %v1759 = vadd.f32 0.0, %v1758
      %v1760 = vpop.f32.mrf.mxu0
      %v1761 = vadd.f32 0.0, %v1760
      %1762 = vmatmul.bf16.gmra.mxu0 %v1715
      %v1763 = vpop.f32.mrf.mxu0
      %v1764 = vadd.f32 0.0, %v1763
      %v1765 = vpop.f32.mrf.mxu0
      %v1766 = vadd.f32 0.0, %v1765
      %1767 = vmatmul.bf16.gmra.mxu0 %v1718
      %v1768 = vpop.f32.mrf.mxu0
      %v1769 = vadd.f32 0.0, %v1768
      %v1770 = vpop.f32.mrf.mxu0
      %v1771 = vadd.f32 0.0, %v1770
      %1772 = vmatmul.bf16.gmra.mxu0 %v1721
      %v1773 = vpop.f32.mrf.mxu0
      %v1774 = vadd.f32 0.0, %v1773
      %v1775 = vpop.f32.mrf.mxu0
      %v1776 = vadd.f32 0.0, %v1775
      %1777 = vmatmul.bf16.gmra.mxu0 %v1724
      %v1778 = vpop.f32.mrf.mxu0
      %v1779 = vadd.f32 0.0, %v1778
      %v1780 = vpop.f32.mrf.mxu0
      %v1781 = vadd.f32 0.0, %v1780
      %1782 = vmatmul.bf16.gmra.mxu0 %v1727
      %v1783 = vpop.f32.mrf.mxu0
      %v1784 = vadd.f32 0.0, %v1783
      %v1785 = vpop.f32.mrf.mxu0
      %v1786 = vadd.f32 0.0, %v1785
      %1787 = vmatmul.bf16.gmra.mxu0 %v1730
      %v1788 = vpop.f32.mrf.mxu0
      %v1789 = vadd.f32 0.0, %v1788
      %v1790 = vpop.f32.mrf.mxu0
      %v1791 = vadd.f32 0.0, %v1790
      %1792 = vmatmul.bf16.gmra.mxu0 %v1733
      %v1793 = vpop.f32.mrf.mxu0
      %v1794 = vadd.f32 0.0, %v1793
      %v1795 = vpop.f32.mrf.mxu0
      %v1796 = vadd.f32 0.0, %v1795
      %1797 = vmatmul.bf16.gmra.mxu0 %v1736
      %v1798 = vpop.f32.mrf.mxu0
      %v1799 = vadd.f32 0.0, %v1798
      %v1800 = vpop.f32.mrf.mxu0
      %v1801 = vadd.f32 0.0, %v1800
      %1802 = vmatmul.bf16.gmra.mxu0 %v1739
      %v1803 = vpop.f32.mrf.mxu0
      %v1804 = vadd.f32 0.0, %v1803
      %v1805 = vpop.f32.mrf.mxu0
      %v1806 = vadd.f32 0.0, %v1805
      %1807 = vdwg.mxu0
      %v1808 = vadd.f32 %v1572, %v1754
      %v1809 = vadd.f32 %v1573, %v1756
      %v1810 = vadd.f32 %v1574, %v1759
      %v1811 = vadd.f32 %v1575, %v1761
      %v1812 = vadd.f32 %v1576, %v1764
      %v1813 = vadd.f32 %v1577, %v1766
      %v1814 = vadd.f32 %v1578, %v1769
      %v1815 = vadd.f32 %v1579, %v1771
      %v1816 = vadd.f32 %v1580, %v1774
      %v1817 = vadd.f32 %v1581, %v1776
      %v1818 = vadd.f32 %v1582, %v1779
      %v1819 = vadd.f32 %v1583, %v1781
      %v1820 = vadd.f32 %v1584, %v1784
      %v1821 = vadd.f32 %v1585, %v1786
      %v1822 = vadd.f32 %v1586, %v1789
      %v1823 = vadd.f32 %v1587, %v1791
      %v1824 = vadd.f32 %v1588, %v1794
      %v1825 = vadd.f32 %v1589, %v1796
      %v1826 = vadd.f32 %v1590, %v1799
      %v1827 = vadd.f32 %v1591, %v1801
      %v1828 = vadd.f32 %v1592, %v1804
      %v1829 = vadd.f32 %v1593, %v1806
      %v1830 = vld [vmem:[%s183 + $0xc] sm:$0xc]
      %s1831 = scalar_lea.vmem %s1, 32
      %v1832 = vld [vmem:[%s1831] sm:$0xf]
      %v1834 = vunpack.c.l.b16 %v1830
      %v1835 = vpack.c.b16 %v1415, %v1834
      %vm1836 = vcmask 1045504
      %v1837 = vrot.slane %v1835, 2
      %v1838 = vrot.slane %v1438, 2
      %v1839 = vsel %vm1836, %v1837, %v1838
      %v1840 = vrot.slane %v1439, 2
      %v1841 = vsel %vm1836, %v1838, %v1840
      %v1842 = vrot.slane %v1440, 2
      %v1843 = vsel %vm1836, %v1840, %v1842
      %v1844 = vrot.slane %v1441, 2
      %v1845 = vsel %vm1836, %v1842, %v1844
      %v1846 = vrot.slane %v1442, 2
      %v1847 = vsel %vm1836, %v1844, %v1846
      %v1848 = vrot.slane %v1443, 2
      %v1849 = vsel %vm1836, %v1846, %v1848
      %v1850 = vrot.slane %v1444, 2
      %v1851 = vsel %vm1836, %v1848, %v1850
      %v1852 = vrot.slane %v1445, 2
      %v1853 = vsel %vm1836, %v1850, %v1852
      %v1854 = vrot.slane %v1446, 2
      %v1855 = vsel %vm1836, %v1852, %v1854
      %v1856 = vrot.slane %v1447, 2
      %v1857 = vsel %vm1836, %v1854, %v1856
      %v1858 = vrot.slane %v1599, 2
      %v1859 = vsel %vm1836, %v1856, %v1858
      %v1861 = vsel %vm372, %v1839, 0
      %v1864 = vsel %vm372, %v1841, 0
      %v1867 = vsel %vm372, %v1843, 0
      %v1870 = vsel %vm372, %v1845, 0
      %v1873 = vsel %vm372, %v1847, 0
      %v1876 = vsel %vm372, %v1849, 0
      %v1879 = vsel %vm372, %v1851, 0
      %v1882 = vsel %vm372, %v1853, 0
      %v1885 = vsel %vm372, %v1855, 0
      %v1888 = vsel %vm372, %v1857, 0
      %v1891 = vsel %vm372, %v1859, 0
      %v1894 = vsel %vm406, %v1832, 0
      %1896 = vmatpush.bf16.msra.mxu0 0
      %1897 = vmatpush.bf16.msra.mxu0 0
      %1898 = vmatpush.bf16.msra.mxu0 0
      %1899 = vmatpush.bf16.msra.mxu0 0
      %1900 = vmatpush.bf16.msra.mxu0 0
      %1901 = vmatpush.bf16.msra.mxu0 0
      %1902 = vmatpush.bf16.msra.mxu0 0
      %1903 = vmatpush.bf16.msra.mxu0 %v1894
      %1904 = vmatmul.bf16.gmra.mxu0 %v1861
      %v1905 = vpop.f32.mrf.mxu0
      %v1906 = vadd.f32 0.0, %v1905
      %v1907 = vpop.f32.mrf.mxu0
      %v1908 = vadd.f32 0.0, %v1907
      %1909 = vmatmul.bf16.gmra.mxu0 %v1864
      %v1910 = vpop.f32.mrf.mxu0
      %v1911 = vadd.f32 0.0, %v1910
      %v1912 = vpop.f32.mrf.mxu0
      %v1913 = vadd.f32 0.0, %v1912
      %1914 = vmatmul.bf16.gmra.mxu0 %v1867
      %v1915 = vpop.f32.mrf.mxu0
      %v1916 = vadd.f32 0.0, %v1915
      %v1917 = vpop.f32.mrf.mxu0
      %v1918 = vadd.f32 0.0, %v1917
      %1919 = vmatmul.bf16.gmra.mxu0 %v1870
      %v1920 = vpop.f32.mrf.mxu0
      %v1921 = vadd.f32 0.0, %v1920
      %v1922 = vpop.f32.mrf.mxu0
      %v1923 = vadd.f32 0.0, %v1922
      %1924 = vmatmul.bf16.gmra.mxu0 %v1873
      %v1925 = vpop.f32.mrf.mxu0
      %v1926 = vadd.f32 0.0, %v1925
      %v1927 = vpop.f32.mrf.mxu0
      %v1928 = vadd.f32 0.0, %v1927
      %1929 = vmatmul.bf16.gmra.mxu0 %v1876
      %v1930 = vpop.f32.mrf.mxu0
      %v1931 = vadd.f32 0.0, %v1930
      %v1932 = vpop.f32.mrf.mxu0
      %v1933 = vadd.f32 0.0, %v1932
      %1934 = vmatmul.bf16.gmra.mxu0 %v1879
      %v1935 = vpop.f32.mrf.mxu0
      %v1936 = vadd.f32 0.0, %v1935
      %v1937 = vpop.f32.mrf.mxu0
      %v1938 = vadd.f32 0.0, %v1937
      %1939 = vmatmul.bf16.gmra.mxu0 %v1882
      %v1940 = vpop.f32.mrf.mxu0
      %v1941 = vadd.f32 0.0, %v1940
      %v1942 = vpop.f32.mrf.mxu0
      %v1943 = vadd.f32 0.0, %v1942
      %1944 = vmatmul.bf16.gmra.mxu0 %v1885
      %v1945 = vpop.f32.mrf.mxu0
      %v1946 = vadd.f32 0.0, %v1945
      %v1947 = vpop.f32.mrf.mxu0
      %v1948 = vadd.f32 0.0, %v1947
      %1949 = vmatmul.bf16.gmra.mxu0 %v1888
      %v1950 = vpop.f32.mrf.mxu0
      %v1951 = vadd.f32 0.0, %v1950
      %v1952 = vpop.f32.mrf.mxu0
      %v1953 = vadd.f32 0.0, %v1952
      %1954 = vmatmul.bf16.gmra.mxu0 %v1891
      %v1955 = vpop.f32.mrf.mxu0
      %v1956 = vadd.f32 0.0, %v1955
      %v1957 = vpop.f32.mrf.mxu0
      %v1958 = vadd.f32 0.0, %v1957
      %1959 = vdwg.mxu0
      %v1960 = vadd.f32 %v1808, %v1906
      %v1961 = vadd.f32 %v1809, %v1908
      %v1962 = vadd.f32 %v1810, %v1911
      %v1963 = vadd.f32 %v1811, %v1913
      %v1964 = vadd.f32 %v1812, %v1916
      %v1965 = vadd.f32 %v1813, %v1918
      %v1966 = vadd.f32 %v1814, %v1921
      %v1967 = vadd.f32 %v1815, %v1923
      %v1968 = vadd.f32 %v1816, %v1926
      %v1969 = vadd.f32 %v1817, %v1928
      %v1970 = vadd.f32 %v1818, %v1931
      %v1971 = vadd.f32 %v1819, %v1933
      %v1972 = vadd.f32 %v1820, %v1936
      %v1973 = vadd.f32 %v1821, %v1938
      %v1974 = vadd.f32 %v1822, %v1941
      %v1975 = vadd.f32 %v1823, %v1943
      %v1976 = vadd.f32 %v1824, %v1946
      %v1977 = vadd.f32 %v1825, %v1948
      %v1978 = vadd.f32 %v1826, %v1951
      %v1979 = vadd.f32 %v1827, %v1953
      %v1980 = vadd.f32 %v1828, %v1956
      %v1981 = vadd.f32 %v1829, %v1958
      %v1982 = vld [vmem:[%s2] sm:$0x1]
      %v1984 = vperm.slane %v1982, 0
      %v1986 = vadd.f32 %v1960, %v1984
      %v1987 = vadd.f32 %v1961, %v1984
      %v1988 = vadd.f32 %v1962, %v1984
      %v1989 = vadd.f32 %v1963, %v1984
      %v1990 = vadd.f32 %v1964, %v1984
      %v1991 = vadd.f32 %v1965, %v1984
      %v1992 = vadd.f32 %v1966, %v1984
      %v1993 = vadd.f32 %v1967, %v1984
      %v1994 = vadd.f32 %v1968, %v1984
      %v1995 = vadd.f32 %v1969, %v1984
      %v1996 = vadd.f32 %v1970, %v1984
      %v1997 = vadd.f32 %v1971, %v1984
      %v1998 = vadd.f32 %v1972, %v1984
      %v1999 = vadd.f32 %v1973, %v1984
      %v2000 = vadd.f32 %v1974, %v1984
      %v2001 = vadd.f32 %v1975, %v1984
      %v2002 = vadd.f32 %v1976, %v1984
      %v2003 = vadd.f32 %v1977, %v1984
      %v2004 = vadd.f32 %v1978, %v1984
      %v2005 = vadd.f32 %v1979, %v1984
      %v2006 = vadd.f32 %v1980, %v1984
      %v2007 = vadd.f32 %v1981, %v1984
      %v2008 = vmax.f32 %v1986, 0.0
      %v2009 = vmax.f32 %v1987, 0.0
      %v2010 = vmax.f32 %v1988, 0.0
      %v2011 = vmax.f32 %v1989, 0.0
      %v2012 = vmax.f32 %v1990, 0.0
      %v2013 = vmax.f32 %v1991, 0.0
      %v2014 = vmax.f32 %v1992, 0.0
      %v2015 = vmax.f32 %v1993, 0.0
      %v2016 = vmax.f32 %v1994, 0.0
      %v2017 = vmax.f32 %v1995, 0.0
      %v2018 = vmax.f32 %v1996, 0.0
      %v2019 = vmax.f32 %v1997, 0.0
      %v2020 = vmax.f32 %v1998, 0.0
      %v2021 = vmax.f32 %v1999, 0.0
      %v2022 = vmax.f32 %v2000, 0.0
      %v2023 = vmax.f32 %v2001, 0.0
      %v2024 = vmax.f32 %v2002, 0.0
      %v2025 = vmax.f32 %v2003, 0.0
      %v2026 = vmax.f32 %v2004, 0.0
      %v2027 = vmax.f32 %v2005, 0.0
      %v2028 = vmax.f32 %v2006, 0.0
      %v2029 = vmax.f32 %v2007, 0.0
      %vm2030 = vcmask 130048
      %2031 = vst.msk [vmem:[%s192] sm:$0xff] %vm2030, %v2008
      %2032 = vst.msk [vmem:[%s192 + $0x8] sm:$0xff] %vm2030, %v2009
      %2033 = vst.msk [vmem:[%s192 + $0x10] sm:$0xff] %vm2030, %v2010
      %2034 = vst.msk [vmem:[%s192 + $0x18] sm:$0xff] %vm2030, %v2011
      %2035 = vst.msk [vmem:[%s192 + $0x20] sm:$0xff] %vm2030, %v2012
      %2036 = vst.msk [vmem:[%s192 + $0x28] sm:$0xff] %vm2030, %v2013
      %2037 = vst.msk [vmem:[%s192 + $0x30] sm:$0xff] %vm2030, %v2014
      %2038 = vst.msk [vmem:[%s192 + $0x38] sm:$0xff] %vm2030, %v2015
      %2039 = vst.msk [vmem:[%s192 + $0x40] sm:$0xff] %vm2030, %v2016
      %2040 = vst.msk [vmem:[%s192 + $0x48] sm:$0xff] %vm2030, %v2017
      %2041 = vst.msk [vmem:[%s192 + $0x50] sm:$0xff] %vm2030, %v2018
      %2042 = vst.msk [vmem:[%s192 + $0x58] sm:$0xff] %vm2030, %v2019
      %2043 = vst.msk [vmem:[%s192 + $0x60] sm:$0xff] %vm2030, %v2020
      %2044 = vst.msk [vmem:[%s192 + $0x68] sm:$0xff] %vm2030, %v2021
      %2045 = vst.msk [vmem:[%s192 + $0x70] sm:$0xff] %vm2030, %v2022
      %2046 = vst.msk [vmem:[%s192 + $0x78] sm:$0xff] %vm2030, %v2023
      %2047 = vst.msk [vmem:[%s192 + $0x80] sm:$0xff] %vm2030, %v2024
      %2048 = vst.msk [vmem:[%s192 + $0x88] sm:$0xff] %vm2030, %v2025
      %2049 = vst.msk [vmem:[%s192 + $0x90] sm:$0xff] %vm2030, %v2026
      %2050 = vst.msk [vmem:[%s192 + $0x98] sm:$0xff] %vm2030, %v2027
      %2051 = vst.msk [vmem:[%s192 + $0xa0] sm:$0xff] %vm2030, %v2028
      %2052 = vst.msk [vmem:[%s192 + $0xa8] sm:$0xff] %vm2030, %v2029
      %s2053 = smul.u32 22, %s19
      %p2054 = scmp.lt.s32.totalorder %s18, 1
      %s2055 = scalar_select %p2054, %s18, 1
      %p2056 = scmp.lt.s32.totalorder %s2053, 21
      %s2057 = scalar_select %p2056, %s2053, 21
      %s2058 = smul.addr %s2055, 22
      %s2059 = sadd.s32 %s2057, %s2058
      %s2060 = smul.addr %s2059, 8
      %s2061 = scalar_lea.vmem %s3, %s2060
      // Predicated region
      $region33: #{tpu_custom_call.1} parent=31 // pred_check
        %p2062 = pneg %p114
      $region34: #{tpu_custom_call.1} parent=31 // pred_check_branch
        %2064 = sbr.rel (%p2062) target = $region36
      $region35: #{tpu_custom_call.1} parent=31 // pred_region
        %s2065 = smul.u32 22, %s19
      $region36: #{tpu_custom_call.1} parent=31 // pred_fallthru
        _
    $region32: #{tpu_custom_call.1} parent=5 // pred_fallthru
      _
    %p2066 = scmp.le.s32.totalorder 2, %s9
    // Predicated region
    $region37: #{tpu_custom_call.1} parent=5 // pred_check
      %p2067 = pneg %p2066
    $region38: #{tpu_custom_call.1} parent=5 // pred_check_branch
      %2069 = sbr.rel (%p2067) target = $region40
    $region39: #{tpu_custom_call.1} parent=5 // pred_region
      %s2070 = ssub.s32 %s9, 2
      // Predicated region
      $region41: #{tpu_custom_call.1} parent=39 // pred_check
        %p2071 = pneg %p120
      $region42: #{tpu_custom_call.1} parent=39 // pred_check_branch
        %2073 = sbr.rel (%p2071) target = $region44
      $region43: #{tpu_custom_call.1} parent=39 // pred_region
        %s2074 = smul.u32 22, %s21
        %p2075 = scmp.lt.s32.totalorder %s20, 1
        %s2076 = scalar_select %p2075, %s20, 1
        %p2077 = scmp.lt.s32.totalorder %s2074, 21
        %s2078 = scalar_select %p2077, %s2074, 21
        %s2079 = smul.addr %s2076, 22
        %s2080 = sadd.s32 %s2078, %s2079
        %s2081 = smul.addr %s2080, 8
        %s2082 = scalar_lea.vmem %s3, %s2081
      $region44: #{tpu_custom_call.1} parent=39 // pred_fallthru
        _
    $region40: #{tpu_custom_call.1} parent=5 // pred_fallthru
      _
  $region6: #{tpu_custom_call.1} parent=0 // loop_footer
    %s13 = sadd.s32 1, %s9
  $region7: #{tpu_custom_call.1} parent=0 // loop_footer_branch
    %8 = sbr.rel target = $region3
  $region8: #{tpu_custom_call.1} parent=0 // loop_exit
    _

</llo_original>
